<compile_context>
chip_gen: v6e
topology: v6e:2x2x1
jax: 0.10.0
libtpu: 0.0.40
codegen_flags: <defaults>
</compile_context>

<pallas_src>
import functools

import jax
import jax.numpy as jnp
from jax.experimental import pallas as pl
from jax.experimental.pallas import tpu as pltpu

LANE = 128     # TPU lane width: hidden / embed dims are zero-padded to this
SUBLANE = 8    # sublane width: graph-count dim padded to this


def _round_up(x, m):
    return ((x + m - 1) // m) * m


# ----------------------------- Pallas kernels ------------------------------

def gcn_agg_relu_kernel(a_ref, h_ref, b_ref, o_ref, acc_ref):
    """Row tile of  relu(A_hat @ H0 + b1)  (GCNConv-1; H0 already includes W1)."""
    k = pl.program_id(1)

    @pl.when(k == 0)
    def _():
        acc_ref[...] = jnp.zeros_like(acc_ref)

    acc_ref[...] += jnp.dot(a_ref[...], h_ref[...],
                            preferred_element_type=jnp.float32)

    @pl.when(k == pl.num_programs(1) - 1)
    def _():
        o_ref[...] = jnp.maximum(acc_ref[...] + b_ref[...], 0.0).astype(o_ref.dtype)


def gcn_agg_linear_kernel(a_ref, h_ref, w_ref, b_ref, o_ref, acc_ref):
    """Row tile of  (A_hat @ H1) @ W2 + b2  (GCNConv-2)."""
    k = pl.program_id(1)

    @pl.when(k == 0)
    def _():
        acc_ref[...] = jnp.zeros_like(acc_ref)

    acc_ref[...] += jnp.dot(a_ref[...], h_ref[...],
                            preferred_element_type=jnp.float32)

    @pl.when(k == pl.num_programs(1) - 1)
    def _():
        h2 = jnp.dot(acc_ref[...].astype(jnp.bfloat16), w_ref[...],
                     preferred_element_type=jnp.float32) + b_ref[...]
        o_ref[...] = h2.astype(o_ref.dtype)


def pool_fc_kernel(p_ref, h_ref, wfc_ref, bfc_ref, o_ref, acc_ref):
    """out = (P @ H2) @ Wfc + bfc, accumulating P @ H2 over node-column tiles."""
    k = pl.program_id(0)

    @pl.when(k == 0)
    def _():
        acc_ref[...] = jnp.zeros_like(acc_ref)

    acc_ref[...] += jnp.dot(p_ref[...], h_ref[...],
                            preferred_element_type=jnp.float32)

    @pl.when(k == pl.num_programs(0) - 1)
    def _():
        out = jnp.dot(acc_ref[...].astype(jnp.bfloat16), wfc_ref[...],
                      preferred_element_type=jnp.float32) + bfc_ref[...]
        o_ref[...] = out.astype(o_ref.dtype)


# ----------------------------- pallas_call wrappers -------------------------

def _gcn_layer1(a, h0, b1, tm, tk):
    n_pad = a.shape[0]
    hpad = h0.shape[1]
    grid = (n_pad // tm, n_pad // tk)
    return pl.pallas_call(
        gcn_agg_relu_kernel,
        out_shape=jax.ShapeDtypeStruct((n_pad, hpad), jnp.bfloat16),
        grid_spec=pltpu.PrefetchScalarGridSpec(
            num_scalar_prefetch=0,
            grid=grid,
            in_specs=[
                pl.BlockSpec((tm, tk), lambda i, k: (i, k)),    # A_hat tile
                pl.BlockSpec((tk, hpad), lambda i, k: (k, 0)),  # H0 rows
                pl.BlockSpec((1, hpad), lambda i, k: (0, 0)),   # bias
            ],
            out_specs=pl.BlockSpec((tm, hpad), lambda i, k: (i, 0)),
            scratch_shapes=[pltpu.VMEM((tm, hpad), jnp.float32)],
        ),
        compiler_params=pltpu.CompilerParams(
            dimension_semantics=("parallel", "arbitrary")),
    )(a, h0, b1)


def _gcn_layer2(a, h1, w2, b2, tm, tk):
    n_pad = a.shape[0]
    hpad = h1.shape[1]
    grid = (n_pad // tm, n_pad // tk)
    return pl.pallas_call(
        gcn_agg_linear_kernel,
        out_shape=jax.ShapeDtypeStruct((n_pad, hpad), jnp.bfloat16),
        grid_spec=pltpu.PrefetchScalarGridSpec(
            num_scalar_prefetch=0,
            grid=grid,
            in_specs=[
                pl.BlockSpec((tm, tk), lambda i, k: (i, k)),      # A_hat tile
                pl.BlockSpec((tk, hpad), lambda i, k: (k, 0)),    # H1 rows
                pl.BlockSpec((hpad, hpad), lambda i, k: (0, 0)),  # W2
                pl.BlockSpec((1, hpad), lambda i, k: (0, 0)),     # bias
            ],
            out_specs=pl.BlockSpec((tm, hpad), lambda i, k: (i, 0)),
            scratch_shapes=[pltpu.VMEM((tm, hpad), jnp.float32)],
        ),
        compiler_params=pltpu.CompilerParams(
            dimension_semantics=("parallel", "arbitrary")),
    )(a, h1, w2, b2)


def _pool_fc(p, h2, wfc, bfc, tk):
    g_pad, n_pad = p.shape
    hpad = h2.shape[1]
    epad = wfc.shape[1]
    grid = (n_pad // tk,)
    return pl.pallas_call(
        pool_fc_kernel,
        out_shape=jax.ShapeDtypeStruct((g_pad, epad), jnp.float32),
        grid_spec=pltpu.PrefetchScalarGridSpec(
            num_scalar_prefetch=0,
            grid=grid,
            in_specs=[
                pl.BlockSpec((g_pad, tk), lambda k: (0, k)),    # P columns
                pl.BlockSpec((tk, hpad), lambda k: (k, 0)),     # H2 rows
                pl.BlockSpec((hpad, epad), lambda k: (0, 0)),   # Wfc
                pl.BlockSpec((1, epad), lambda k: (0, 0)),      # bfc
            ],
            out_specs=pl.BlockSpec((g_pad, epad), lambda k: (0, 0)),
            scratch_shapes=[pltpu.VMEM((g_pad, hpad), jnp.float32)],
        ),
        compiler_params=pltpu.CompilerParams(
            dimension_semantics=("arbitrary",)),
    )(p, h2, wfc, bfc)


def gcn_forward(a_pad, p_pad, x_idx_pad, w1_pad, b1_pad, w2_pad, b2_pad,
                wfc_pad, bfc_pad, *, tm, tk):
    """Full GCN forward on padded, bf16-cast operands. Returns [G_pad, E_pad] f32."""
    # Embedding-row gather replaces onehot(x) @ W1 (X one-hot  =>  X @ W1 == W1[x]).
    h0 = jnp.take(w1_pad, x_idx_pad, axis=0).astype(jnp.bfloat16)
    h1 = _gcn_layer1(a_pad, h0, b1_pad, tm, tk)
    # TODO(synk): F.dropout(..., training=False) is the identity in eval mode -> no-op.
    h2 = _gcn_layer2(a_pad, h1, w2_pad, b2_pad, tm, tk)
    return _pool_fc(p_pad, h2, wfc_pad, bfc_pad, tk)


# ----------------------------- graph preprocessing glue ---------------------
# NOTE: these are per-graph-structure constants; in a real pipeline they should be
# built once and cached across forward calls rather than rebuilt per step.

def build_normalized_adjacency(edge_index, num_nodes):
    """Dense A_hat = D^{-1/2} (A + I) D^{-1/2}, matching PyG GCNConv aggregation.
    NOTE: duplicate edges collapse to weight 1 here (PyG would count them twice)."""
    src = edge_index[0]
    dst = edge_index[1]
    a = jnp.zeros((num_nodes, num_nodes), jnp.float32)
    a = a.at[dst, src].set(1.0)
    a = a + jnp.eye(num_nodes, dtype=jnp.float32)
    deg = a.sum(axis=1)
    dinv = jnp.where(deg > 0, 1.0 / jnp.sqrt(deg), 0.0)
    return dinv[:, None] * a * dinv[None, :]


def build_mean_pool_matrix(batch, num_graphs, num_nodes):
    """P[g, n] = 1/|V_g| if batch[n] == g else 0  ->  P @ H == global_mean_pool."""
    onehot = jax.nn.one_hot(batch, num_graphs, dtype=jnp.float32).T   # [G, N]
    counts = jnp.clip(onehot.sum(axis=1, keepdims=True), 1.0, None)
    return onehot / counts


def _pad2d(m, shape):
    out = jnp.zeros(shape, m.dtype)
    return out.at[:m.shape[0], :m.shape[1]].set(m)


def choose_tiling(n):
    """(n_pad, tm, tk) for the dense A_hat aggregation.  Small graphs: one tile.
    Large graphs: 256-row x 512-K tiles -> well inside v7x's 64 MiB VMEM with
    double buffering (A tile 256x512 bf16 = 256 KiB per buffer)."""
    if n <= 256:
        n_pad = _round_up(n, LANE)
        return n_pad, n_pad, n_pad
    n_pad = _round_up(n, 512)
    return n_pad, 256, 512


# ----------------------------- demo / self-check ----------------------------

if __name__ == "__main__":
    # Small config consistent with the module's __init__:
    num_feature_dim = 32   # config.num_feature_dim (also one_hot num_classes)
    hidden = 32            # config.hidden
    embed_dim = 16         # config.embed_dim
    N = 64                 # total nodes across the batch
    E = 128                # directed edges
    G = 2                  # graphs in the batch

    key = jax.random.PRNGKey(0)
    k_x, k_src, k_dst, k_w1, k_b1, k_w2, k_b2, k_wfc, k_bfc = jax.random.split(key, 9)

    # Inputs as the PyTorch forward expects: integer node features, edge_index, batch.
    x_idx = jax.random.randint(k_x, (N,), 0, num_feature_dim, dtype=jnp.int32)
    edge_index = jnp.stack([
        jax.random.randint(k_src, (E,), 0, N, dtype=jnp.int32),
        jax.random.randint(k_dst, (E,), 0, N, dtype=jnp.int32),
    ], axis=0)
    batch = jnp.concatenate([jnp.zeros(N // 2, jnp.int32), jnp.ones(N - N // 2, jnp.int32)])

    # Parameters (shapes from GCNConv / nn.Linear in __init__); weights stored [in, out].
    w1 = jax.random.normal(k_w1, (num_feature_dim, hidden), jnp.float32) * 0.1
    b1 = jax.random.normal(k_b1, (1, hidden), jnp.float32) * 0.1
    w2 = jax.random.normal(k_w2, (hidden, hidden), jnp.float32) * 0.1
    b2 = jax.random.normal(k_b2, (1, hidden), jnp.float32) * 0.1
    wfc = jax.random.normal(k_wfc, (hidden, embed_dim), jnp.float32) * 0.1  # = fc.weight.T
    bfc = jax.random.normal(k_bfc, (1, embed_dim), jnp.float32) * 0.1

    # --- padding / dtype glue (cacheable across calls) ---
    n_pad, tm, tk = choose_tiling(N)
    hpad = _round_up(hidden, LANE)
    epad = _round_up(embed_dim, LANE)
    g_pad = _round_up(G, SUBLANE)

    w1_pad = _pad2d(w1, (num_feature_dim, hpad))            # gathered rows -> bf16 in fwd
    b1_pad = _pad2d(b1, (1, hpad))
    w2_pad = _pad2d(w2, (hpad, hpad)).astype(jnp.bfloat16)
    b2_pad = _pad2d(b2, (1, hpad))
    wfc_pad = _pad2d(wfc, (hpad, epad)).astype(jnp.bfloat16)
    bfc_pad = _pad2d(bfc, (1, epad))

    a_hat = build_normalized_adjacency(edge_index, N)                       # [N, N]
    a_pad = _pad2d(a_hat, (n_pad, n_pad)).astype(jnp.bfloat16)
    pool_mat = build_mean_pool_matrix(batch, G, N)                          # [G, N]
    p_pad = _pad2d(pool_mat, (g_pad, n_pad)).astype(jnp.bfloat16)
    x_idx_pad = jnp.zeros((n_pad,), jnp.int32).at[:N].set(x_idx)

    fwd = jax.jit(functools.partial(gcn_forward, tm=tm, tk=tk))
    out_pad = jax.block_until_ready(
        fwd(a_pad, p_pad, x_idx_pad, w1_pad, b1_pad, w2_pad, b2_pad, wfc_pad, bfc_pad))
    out = out_pad[:G, :embed_dim]

    # --- references ---
    # (a) exact f32 module math (one-hot path), loose tolerance due to bf16 operands.
    x_onehot = jax.nn.one_hot(x_idx, num_feature_dim, dtype=jnp.float32)
    h_f32 = jnp.maximum(a_hat @ (x_onehot @ w1) + b1, 0.0)
    h_f32 = a_hat @ (h_f32 @ w2) + b2
    ref_f32 = pool_mat @ h_f32 @ wfc + bfc

    # (b) bf16-matched reference (same casts / accumulation dtype as the kernels).
    bf = jnp.bfloat16
    a_bf = a_hat.astype(bf)
    h0_bf = w1[x_idx].astype(bf)
    h1_bf = jnp.maximum(
        jnp.dot(a_bf, h0_bf, preferred_element_type=jnp.float32) + b1, 0.0).astype(bf)
    agg2 = jnp.dot(a_bf, h1_bf, preferred_element_type=jnp.float32).astype(bf)
    h2_bf = (jnp.dot(agg2, w2.astype(bf), preferred_element_type=jnp.float32) + b2).astype(bf)
    pooled = jnp.dot(pool_mat.astype(bf), h2_bf, preferred_element_type=jnp.float32).astype(bf)
    ref_bf = jnp.dot(pooled, wfc.astype(bf), preferred_element_type=jnp.float32) + bfc

    assert out.shape == (G, embed_dim)
    assert jnp.allclose(out, ref_bf, atol=1e-3, rtol=1e-3)
    assert jnp.allclose(out, ref_f32, atol=5e-2, rtol=5e-2)

    print("KERNEL_OK")
</pallas_src>

<mosaic_0001>
module attributes {stable_mosaic.version = 11 : i64} {
  func.func @gcn_agg_relu_kernel(%arg0: i32, %arg1: i32, %arg2: memref<128x128xbf16, #tpu.memory_space<vmem>>, %arg3: memref<128x128xbf16, #tpu.memory_space<vmem>>, %arg4: memref<1x128xf32, #tpu.memory_space<vmem>>, %arg5: memref<128x128xbf16, #tpu.memory_space<vmem>>, %arg6: memref<128x128xf32, #tpu.memory_space<vmem>>) attributes {dimension_semantics = [#tpu.dimension_semantics<parallel>, #tpu.dimension_semantics<arbitrary>], iteration_bounds = array<i64: 1, 1>, scalar_prefetch = 0 : i64, scratch_operands = 1 : i64, tpu.core_type = #tpu.core_type<tc>, window_params = [{transform_indices = @transform_0, window_bounds = array<i64: 128, 128>}, {transform_indices = @transform_1, window_bounds = array<i64: 128, 128>}, {pipeline_mode = #tpu.pipeline_mode<synchronous>, transform_indices = @transform_2, window_bounds = array<i64: 1, 128>}, {transform_indices = @transform_3, window_bounds = array<i64: 128, 128>}]} {
    %c0_i32 = arith.constant 0 : i32
    %0 = arith.cmpi eq, %arg1, %c0_i32 : i32
    %1 = arith.extui %0 : i1 to i32
    %c0_i32_0 = arith.constant 0 : i32
    %2 = arith.cmpi ne, %1, %c0_i32_0 : i32
    scf.if %2 {
      %cst_10 = arith.constant 0.000000e+00 : f32
      %12 = vector.broadcast %cst_10 : f32 to vector<128x128xf32>
      %c0_11 = arith.constant 0 : index
      %c0_12 = arith.constant 0 : index
      %13 = vector.load %arg6[%c0_11, %c0_12] : memref<128x128xf32, #tpu.memory_space<vmem>>, vector<128x128xf32>
      tpu.vector_store %arg6[%c0_11, %c0_12], %12 {strides = array<i32>} : memref<128x128xf32, #tpu.memory_space<vmem>>, vector<128x128xf32>,
    } else {
    }
    %c0 = arith.constant 0 : index
    %c0_1 = arith.constant 0 : index
    %3 = vector.load %arg6[%c0, %c0_1] : memref<128x128xf32, #tpu.memory_space<vmem>>, vector<128x128xf32>
    %c0_2 = arith.constant 0 : index
    %c0_3 = arith.constant 0 : index
    %4 = vector.load %arg2[%c0_2, %c0_3] : memref<128x128xbf16, #tpu.memory_space<vmem>>, vector<128x128xbf16>
    %c0_4 = arith.constant 0 : index
    %c0_5 = arith.constant 0 : index
    %5 = vector.load %arg3[%c0_4, %c0_5] : memref<128x128xbf16, #tpu.memory_space<vmem>>, vector<128x128xbf16>
    %cst = arith.constant dense<0.000000e+00> : vector<128x128xf32>
    %6 = tpu.matmul %4, %5, %cst {dimension_numbers = #tpu.dot_dimension_numbers<[1], [0], [0], [1], [0, 0, 1, 1], [], []>} : vector<128x128xbf16>, vector<128x128xbf16>, vector<128x128xf32> -> vector<128x128xf32>
    %7 = arith.addf %3, %6 : vector<128x128xf32>
    %c0_6 = arith.constant 0 : index
    %c0_7 = arith.constant 0 : index
    %8 = vector.load %arg6[%c0_6, %c0_7] : memref<128x128xf32, #tpu.memory_space<vmem>>, vector<128x128xf32>
    tpu.vector_store %arg6[%c0_6, %c0_7], %7 {strides = array<i32>} : memref<128x128xf32, #tpu.memory_space<vmem>>, vector<128x128xf32>,
    %c0_i32_8 = arith.constant 0 : i32
    %9 = arith.cmpi eq, %arg1, %c0_i32_8 : i32
    %10 = arith.extui %9 : i1 to i32
    %c0_i32_9 = arith.constant 0 : i32
    %11 = arith.cmpi ne, %10, %c0_i32_9 : i32
    scf.if %11 {
      %c0_10 = arith.constant 0 : index
      %c0_11 = arith.constant 0 : index
      %12 = vector.load %arg6[%c0_10, %c0_11] : memref<128x128xf32, #tpu.memory_space<vmem>>, vector<128x128xf32>
      %c0_12 = arith.constant 0 : index
      %c0_13 = arith.constant 0 : index
      %13 = vector.load %arg4[%c0_12, %c0_13] : memref<1x128xf32, #tpu.memory_space<vmem>>, vector<1x128xf32>
      %14 = vector.broadcast %13 : vector<1x128xf32> to vector<128x128xf32>
      %15 = arith.addf %12, %14 : vector<128x128xf32>
      %cst_14 = arith.constant 0.000000e+00 : f32
      %16 = vector.broadcast %cst_14 : f32 to vector<128x128xf32>
      %17 = arith.maximumf %15, %16 : vector<128x128xf32>
      %18 = arith.truncf %17 : vector<128x128xf32> to vector<128x128xbf16>
      %c0_15 = arith.constant 0 : index
      %c0_16 = arith.constant 0 : index
      %19 = vector.load %arg5[%c0_15, %c0_16] : memref<128x128xbf16, #tpu.memory_space<vmem>>, vector<128x128xbf16>
      tpu.vector_store %arg5[%c0_15, %c0_16], %18 {strides = array<i32>} : memref<128x128xbf16, #tpu.memory_space<vmem>>, vector<128x128xbf16>,
    } else {
    }
    return
  }
  func.func @transform_0(%arg0: i32, %arg1: i32) -> (i32, i32) {
    %c0_i32 = arith.constant 0 : i32
    return %arg0, %arg1 : i32, i32
  }
  func.func @transform_1(%arg0: i32, %arg1: i32) -> (i32, i32) {
    %c0_i32 = arith.constant 0 : i32
    %c0_i32_0 = arith.constant 0 : i32
    return %arg1, %c0_i32 : i32, i32
  }
  func.func @transform_2(%arg0: i32, %arg1: i32) -> (i32, i32) {
    %c0_i32 = arith.constant 0 : i32
    %c0_i32_0 = arith.constant 0 : i32
    %c0_i32_1 = arith.constant 0 : i32
    return %c0_i32, %c0_i32_0 : i32, i32
  }
  func.func @transform_3(%arg0: i32, %arg1: i32) -> (i32, i32) {
    %c0_i32 = arith.constant 0 : i32
    %c0_i32_0 = arith.constant 0 : i32
    return %arg0, %c0_i32 : i32, i32
  }
}

module attributes {stable_mosaic.version = 11 : i64} {
  func.func @gcn_agg_linear_kernel(%arg0: i32, %arg1: i32, %arg2: memref<128x128xbf16, #tpu.memory_space<vmem>>, %arg3: memref<128x128xbf16, #tpu.memory_space<vmem>>, %arg4: memref<128x128xbf16, #tpu.memory_space<vmem>>, %arg5: memref<1x128xf32, #tpu.memory_space<vmem>>, %arg6: memref<128x128xbf16, #tpu.memory_space<vmem>>, %arg7: memref<128x128xf32, #tpu.memory_space<vmem>>) attributes {dimension_semantics = [#tpu.dimension_semantics<parallel>, #tpu.dimension_semantics<arbitrary>], iteration_bounds = array<i64: 1, 1>, scalar_prefetch = 0 : i64, scratch_operands = 1 : i64, tpu.core_type = #tpu.core_type<tc>, window_params = [{transform_indices = @transform_0, window_bounds = array<i64: 128, 128>}, {transform_indices = @transform_1, window_bounds = array<i64: 128, 128>}, {pipeline_mode = #tpu.pipeline_mode<synchronous>, transform_indices = @transform_2, window_bounds = array<i64: 128, 128>}, {pipeline_mode = #tpu.pipeline_mode<synchronous>, transform_indices = @transform_3, window_bounds = array<i64: 1, 128>}, {transform_indices = @transform_4, window_bounds = array<i64: 128, 128>}]} {
    %c0_i32 = arith.constant 0 : i32
    %0 = arith.cmpi eq, %arg1, %c0_i32 : i32
    %1 = arith.extui %0 : i1 to i32
    %c0_i32_0 = arith.constant 0 : i32
    %2 = arith.cmpi ne, %1, %c0_i32_0 : i32
    scf.if %2 {
      %cst_10 = arith.constant 0.000000e+00 : f32
      %12 = vector.broadcast %cst_10 : f32 to vector<128x128xf32>
      %c0_11 = arith.constant 0 : index
      %c0_12 = arith.constant 0 : index
      %13 = vector.load %arg7[%c0_11, %c0_12] : memref<128x128xf32, #tpu.memory_space<vmem>>, vector<128x128xf32>
      tpu.vector_store %arg7[%c0_11, %c0_12], %12 {strides = array<i32>} : memref<128x128xf32, #tpu.memory_space<vmem>>, vector<128x128xf32>,
    } else {
    }
    %c0 = arith.constant 0 : index
    %c0_1 = arith.constant 0 : index
    %3 = vector.load %arg7[%c0, %c0_1] : memref<128x128xf32, #tpu.memory_space<vmem>>, vector<128x128xf32>
    %c0_2 = arith.constant 0 : index
    %c0_3 = arith.constant 0 : index
    %4 = vector.load %arg2[%c0_2, %c0_3] : memref<128x128xbf16, #tpu.memory_space<vmem>>, vector<128x128xbf16>
    %c0_4 = arith.constant 0 : index
    %c0_5 = arith.constant 0 : index
    %5 = vector.load %arg3[%c0_4, %c0_5] : memref<128x128xbf16, #tpu.memory_space<vmem>>, vector<128x128xbf16>
    %cst = arith.constant dense<0.000000e+00> : vector<128x128xf32>
    %6 = tpu.matmul %4, %5, %cst {dimension_numbers = #tpu.dot_dimension_numbers<[1], [0], [0], [1], [0, 0, 1, 1], [], []>} : vector<128x128xbf16>, vector<128x128xbf16>, vector<128x128xf32> -> vector<128x128xf32>
    %7 = arith.addf %3, %6 : vector<128x128xf32>
    %c0_6 = arith.constant 0 : index
    %c0_7 = arith.constant 0 : index
    %8 = vector.load %arg7[%c0_6, %c0_7] : memref<128x128xf32, #tpu.memory_space<vmem>>, vector<128x128xf32>
    tpu.vector_store %arg7[%c0_6, %c0_7], %7 {strides = array<i32>} : memref<128x128xf32, #tpu.memory_space<vmem>>, vector<128x128xf32>,
    %c0_i32_8 = arith.constant 0 : i32
    %9 = arith.cmpi eq, %arg1, %c0_i32_8 : i32
    %10 = arith.extui %9 : i1 to i32
    %c0_i32_9 = arith.constant 0 : i32
    %11 = arith.cmpi ne, %10, %c0_i32_9 : i32
    scf.if %11 {
      %c0_10 = arith.constant 0 : index
      %c0_11 = arith.constant 0 : index
      %12 = vector.load %arg7[%c0_10, %c0_11] : memref<128x128xf32, #tpu.memory_space<vmem>>, vector<128x128xf32>
      %13 = arith.truncf %12 : vector<128x128xf32> to vector<128x128xbf16>
      %c0_12 = arith.constant 0 : index
      %c0_13 = arith.constant 0 : index
      %14 = vector.load %arg4[%c0_12, %c0_13] : memref<128x128xbf16, #tpu.memory_space<vmem>>, vector<128x128xbf16>
      %cst_14 = arith.constant dense<0.000000e+00> : vector<128x128xf32>
      %15 = tpu.matmul %13, %14, %cst_14 {dimension_numbers = #tpu.dot_dimension_numbers<[1], [0], [0], [1], [0, 0, 1, 1], [], []>} : vector<128x128xbf16>, vector<128x128xbf16>, vector<128x128xf32> -> vector<128x128xf32>
      %c0_15 = arith.constant 0 : index
      %c0_16 = arith.constant 0 : index
      %16 = vector.load %arg5[%c0_15, %c0_16] : memref<1x128xf32, #tpu.memory_space<vmem>>, vector<1x128xf32>
      %17 = vector.broadcast %16 : vector<1x128xf32> to vector<128x128xf32>
      %18 = arith.addf %15, %17 : vector<128x128xf32>
      %19 = arith.truncf %18 : vector<128x128xf32> to vector<128x128xbf16>
      %c0_17 = arith.constant 0 : index
      %c0_18 = arith.constant 0 : index
      %20 = vector.load %arg6[%c0_17, %c0_18] : memref<128x128xbf16, #tpu.memory_space<vmem>>, vector<128x128xbf16>
      tpu.vector_store %arg6[%c0_17, %c0_18], %19 {strides = array<i32>} : memref<128x128xbf16, #tpu.memory_space<vmem>>, vector<128x128xbf16>,
    } else {
    }
    return
  }
  func.func @transform_0(%arg0: i32, %arg1: i32) -> (i32, i32) {
    %c0_i32 = arith.constant 0 : i32
    return %arg0, %arg1 : i32, i32
  }
  func.func @transform_1(%arg0: i32, %arg1: i32) -> (i32, i32) {
    %c0_i32 = arith.constant 0 : i32
    %c0_i32_0 = arith.constant 0 : i32
    return %arg1, %c0_i32 : i32, i32
  }
  func.func @transform_2(%arg0: i32, %arg1: i32) -> (i32, i32) {
    %c0_i32 = arith.constant 0 : i32
    %c0_i32_0 = arith.constant 0 : i32
    %c0_i32_1 = arith.constant 0 : i32
    return %c0_i32, %c0_i32_0 : i32, i32
  }
  func.func @transform_3(%arg0: i32, %arg1: i32) -> (i32, i32) {
    %c0_i32 = arith.constant 0 : i32
    %c0_i32_0 = arith.constant 0 : i32
    %c0_i32_1 = arith.constant 0 : i32
    return %c0_i32, %c0_i32_0 : i32, i32
  }
  func.func @transform_4(%arg0: i32, %arg1: i32) -> (i32, i32) {
    %c0_i32 = arith.constant 0 : i32
    %c0_i32_0 = arith.constant 0 : i32
    return %arg0, %c0_i32 : i32, i32
  }
}

module attributes {stable_mosaic.version = 11 : i64} {
  func.func @pool_fc_kernel(%arg0: i32, %arg1: memref<8x128xbf16, #tpu.memory_space<vmem>>, %arg2: memref<128x128xbf16, #tpu.memory_space<vmem>>, %arg3: memref<128x128xbf16, #tpu.memory_space<vmem>>, %arg4: memref<1x128xf32, #tpu.memory_space<vmem>>, %arg5: memref<8x128xf32, #tpu.memory_space<vmem>>, %arg6: memref<8x128xf32, #tpu.memory_space<vmem>>) attributes {dimension_semantics = [#tpu.dimension_semantics<arbitrary>], iteration_bounds = array<i64: 1>, scalar_prefetch = 0 : i64, scratch_operands = 1 : i64, tpu.core_type = #tpu.core_type<tc>, window_params = [{transform_indices = @transform_0, window_bounds = array<i64: 8, 128>}, {transform_indices = @transform_1, window_bounds = array<i64: 128, 128>}, {pipeline_mode = #tpu.pipeline_mode<synchronous>, transform_indices = @transform_2, window_bounds = array<i64: 128, 128>}, {pipeline_mode = #tpu.pipeline_mode<synchronous>, transform_indices = @transform_3, window_bounds = array<i64: 1, 128>}, {pipeline_mode = #tpu.pipeline_mode<synchronous>, transform_indices = @transform_4, window_bounds = array<i64: 8, 128>}]} {
    %c0_i32 = arith.constant 0 : i32
    %0 = arith.cmpi eq, %arg0, %c0_i32 : i32
    %1 = arith.extui %0 : i1 to i32
    %c0_i32_0 = arith.constant 0 : i32
    %2 = arith.cmpi ne, %1, %c0_i32_0 : i32
    scf.if %2 {
      %cst_10 = arith.constant 0.000000e+00 : f32
      %12 = vector.broadcast %cst_10 : f32 to vector<8x128xf32>
      %c0_11 = arith.constant 0 : index
      %c0_12 = arith.constant 0 : index
      %13 = vector.load %arg6[%c0_11, %c0_12] : memref<8x128xf32, #tpu.memory_space<vmem>>, vector<8x128xf32>
      tpu.vector_store %arg6[%c0_11, %c0_12], %12 {strides = array<i32>} : memref<8x128xf32, #tpu.memory_space<vmem>>, vector<8x128xf32>,
    } else {
    }
    %c0 = arith.constant 0 : index
    %c0_1 = arith.constant 0 : index
    %3 = vector.load %arg6[%c0, %c0_1] : memref<8x128xf32, #tpu.memory_space<vmem>>, vector<8x128xf32>
    %c0_2 = arith.constant 0 : index
    %c0_3 = arith.constant 0 : index
    %4 = vector.load %arg1[%c0_2, %c0_3] : memref<8x128xbf16, #tpu.memory_space<vmem>>, vector<8x128xbf16>
    %c0_4 = arith.constant 0 : index
    %c0_5 = arith.constant 0 : index
    %5 = vector.load %arg2[%c0_4, %c0_5] : memref<128x128xbf16, #tpu.memory_space<vmem>>, vector<128x128xbf16>
    %cst = arith.constant dense<0.000000e+00> : vector<8x128xf32>
    %6 = tpu.matmul %4, %5, %cst {dimension_numbers = #tpu.dot_dimension_numbers<[1], [0], [0], [1], [0, 0, 1, 1], [], []>} : vector<8x128xbf16>, vector<128x128xbf16>, vector<8x128xf32> -> vector<8x128xf32>
    %7 = arith.addf %3, %6 : vector<8x128xf32>
    %c0_6 = arith.constant 0 : index
    %c0_7 = arith.constant 0 : index
    %8 = vector.load %arg6[%c0_6, %c0_7] : memref<8x128xf32, #tpu.memory_space<vmem>>, vector<8x128xf32>
    tpu.vector_store %arg6[%c0_6, %c0_7], %7 {strides = array<i32>} : memref<8x128xf32, #tpu.memory_space<vmem>>, vector<8x128xf32>,
    %c0_i32_8 = arith.constant 0 : i32
    %9 = arith.cmpi eq, %arg0, %c0_i32_8 : i32
    %10 = arith.extui %9 : i1 to i32
    %c0_i32_9 = arith.constant 0 : i32
    %11 = arith.cmpi ne, %10, %c0_i32_9 : i32
    scf.if %11 {
      %c0_10 = arith.constant 0 : index
      %c0_11 = arith.constant 0 : index
      %12 = vector.load %arg6[%c0_10, %c0_11] : memref<8x128xf32, #tpu.memory_space<vmem>>, vector<8x128xf32>
      %13 = arith.truncf %12 : vector<8x128xf32> to vector<8x128xbf16>
      %c0_12 = arith.constant 0 : index
      %c0_13 = arith.constant 0 : index
      %14 = vector.load %arg3[%c0_12, %c0_13] : memref<128x128xbf16, #tpu.memory_space<vmem>>, vector<128x128xbf16>
      %cst_14 = arith.constant dense<0.000000e+00> : vector<8x128xf32>
      %15 = tpu.matmul %13, %14, %cst_14 {dimension_numbers = #tpu.dot_dimension_numbers<[1], [0], [0], [1], [0, 0, 1, 1], [], []>} : vector<8x128xbf16>, vector<128x128xbf16>, vector<8x128xf32> -> vector<8x128xf32>
      %c0_15 = arith.constant 0 : index
      %c0_16 = arith.constant 0 : index
      %16 = vector.load %arg4[%c0_15, %c0_16] : memref<1x128xf32, #tpu.memory_space<vmem>>, vector<1x128xf32>
      %17 = vector.broadcast %16 : vector<1x128xf32> to vector<8x128xf32>
      %18 = arith.addf %15, %17 : vector<8x128xf32>
      %c0_17 = arith.constant 0 : index
      %c0_18 = arith.constant 0 : index
      %19 = vector.load %arg5[%c0_17, %c0_18] : memref<8x128xf32, #tpu.memory_space<vmem>>, vector<8x128xf32>
      tpu.vector_store %arg5[%c0_17, %c0_18], %18 {strides = array<i32>} : memref<8x128xf32, #tpu.memory_space<vmem>>, vector<8x128xf32>,
    } else {
    }
    return
  }
  func.func @transform_0(%arg0: i32) -> (i32, i32) {
    %c0_i32 = arith.constant 0 : i32
    %c0_i32_0 = arith.constant 0 : i32
    return %c0_i32, %arg0 : i32, i32
  }
  func.func @transform_1(%arg0: i32) -> (i32, i32) {
    %c0_i32 = arith.constant 0 : i32
    %c0_i32_0 = arith.constant 0 : i32
    return %arg0, %c0_i32 : i32, i32
  }
  func.func @transform_2(%arg0: i32) -> (i32, i32) {
    %c0_i32 = arith.constant 0 : i32
    %c0_i32_0 = arith.constant 0 : i32
    %c0_i32_1 = arith.constant 0 : i32
    return %c0_i32, %c0_i32_0 : i32, i32
  }
  func.func @transform_3(%arg0: i32) -> (i32, i32) {
    %c0_i32 = arith.constant 0 : i32
    %c0_i32_0 = arith.constant 0 : i32
    %c0_i32_1 = arith.constant 0 : i32
    return %c0_i32, %c0_i32_0 : i32, i32
  }
  func.func @transform_4(%arg0: i32) -> (i32, i32) {
    %c0_i32 = arith.constant 0 : i32
    %c0_i32_0 = arith.constant 0 : i32
    %c0_i32_1 = arith.constant 0 : i32
    return %c0_i32, %c0_i32_0 : i32, i32
  }
}

</mosaic_0001>

<llo_original>
// kernel: gcn_forward.5
$region0: #{gcn_forward.5}
  #allocation0 [shape = 'u32[]', space=smem, size = 0x4, offset = 0x4, fixed_abs, tag = 'smem constant byte address 0x4 - core index']
  #allocation1 [shape = 'u32[144,128]{1,0:T(1,128)}', space=vmem, size = 0x12000, scoped, tag = 'internal scratch']
  #allocation2 [shape = 'f32[8,128]{1,0:T(8,128)}', space=vmem, size = 0x1000, scoped, tag = 'scratch operand']
  %s0 = inlined_call_operand.vmem [shape: bf16[8,128], index: 0, kind: input, shape index: {}]
  %s1 = inlined_call_operand.vmem [shape: bf16[128,128], index: 1, kind: input, shape index: {}]
  %s2 = inlined_call_operand.vmem [shape: bf16[128,128], index: 2, kind: input, shape index: {}]
  %s3 = inlined_call_operand.vmem [shape: f32[1,128], index: 3, kind: input, shape index: {}]
  %s4 = inlined_call_operand.hbm [shape: f32[8,128], index: 4, kind: output, shape index: {}]
  %s5 = sld [smem:[#allocation0]]
  $region34: #{gcn_forward.5} parent=0
    _
  %s7 = ssub.s32 1, %s5
  %s8 = scalar_select 0, %s7, %s5
  $region1: #{gcn_forward.5} parent=0
    #allocation3 [shape = 'u8[4096]{0}', space=vmem, size = 0x1000, scoped, tag = 'output window, operand 0, single buffered']
    #allocation4 [shape = 's32[1]{0}', space=sflag, size = 0x4, scoped, tag = 'scoped memory for gcn_forward.5']
    %9 = vsyncpa [#allocation4], 0
    // Predicated region
    $region2: #{gcn_forward.5} parent=1 // pred_check
      _
    $region3: #{gcn_forward.5} parent=1 // pred_check_branch
      %11 = sbr.rel (0) target = $region5
    $region4: #{gcn_forward.5} parent=1 // pred_region
      _
    $region5: #{gcn_forward.5} parent=1 // pred_fallthru
      _
    // Predicated region
    $region6: #{gcn_forward.5} parent=1 // pred_check
      _
    $region7: #{gcn_forward.5} parent=1 // pred_check_branch
      %13 = sbr.rel (0) target = $region9
    $region8: #{gcn_forward.5} parent=1 // pred_region
      _
    $region9: #{gcn_forward.5} parent=1 // pred_fallthru
      _
    // Predicated region
    $region10: #{gcn_forward.5} parent=1 // pred_check
      _
    $region11: #{gcn_forward.5} parent=1 // pred_check_branch
      %15 = sbr.rel (0) target = $region13
    $region12: #{gcn_forward.5} parent=1 // pred_region
      _
    $region13: #{gcn_forward.5} parent=1 // pred_fallthru
      _
    // Predicated region
    $region14: #{gcn_forward.5} parent=1 // pred_check
      _
    $region15: #{gcn_forward.5} parent=1 // pred_check_branch
      %17 = sbr.rel (0) target = $region17
    $region16: #{gcn_forward.5} parent=1 // pred_region
      _
    $region17: #{gcn_forward.5} parent=1 // pred_fallthru
      _
    %p19 = scmp.eq.s32.totalorder 0, 0
    // Predicated region
    $region18: #{gcn_forward.5} parent=1 // pred_check
      %p20 = pneg %p19
    $region19: #{gcn_forward.5} parent=1 // pred_check_branch
      %22 = sbr.rel (%p20) target = $region21
    $region20: #{gcn_forward.5} parent=1 // pred_region
      %23 = vst [vmem:[#allocation2] sm:$0xff] 0.0
    $region21: #{gcn_forward.5} parent=1 // pred_fallthru
      _
    %v24 = vld [vmem:[#allocation2] sm:$0xff]
    %v25 = vld [vmem:[%s0] sm:$0xf]
    %v26 = vld [vmem:[%s1] sm:$0xf]
    %v27 = vld [vmem:[%s1 + $0x4] sm:$0xf]
    %v28 = vld [vmem:[%s1 + $0x8] sm:$0xf]
    %v29 = vld [vmem:[%s1 + $0xc] sm:$0xf]
    %v30 = vld [vmem:[%s1 + $0x10] sm:$0xf]
    %v31 = vld [vmem:[%s1 + $0x14] sm:$0xf]
    %v32 = vld [vmem:[%s1 + $0x18] sm:$0xf]
    %v33 = vld [vmem:[%s1 + $0x1c] sm:$0xf]
    %v34 = vld [vmem:[%s1 + $0x20] sm:$0xf]
    %v35 = vld [vmem:[%s1 + $0x24] sm:$0xf]
    %v36 = vld [vmem:[%s1 + $0x28] sm:$0xf]
    %v37 = vld [vmem:[%s1 + $0x2c] sm:$0xf]
    %v38 = vld [vmem:[%s1 + $0x30] sm:$0xf]
    %v39 = vld [vmem:[%s1 + $0x34] sm:$0xf]
    %v40 = vld [vmem:[%s1 + $0x38] sm:$0xf]
    %v41 = vld [vmem:[%s1 + $0x3c] sm:$0xf]
    %v58 = vunpack.c.l.b16 %v26
    %v59 = vunpack.c.l.b16 %v27
    %v60 = vunpack.c.l.b16 %v28
    %v61 = vunpack.c.l.b16 %v29
    %v62 = vunpack.c.l.b16 %v30
    %v63 = vunpack.c.l.b16 %v31
    %v64 = vunpack.c.l.b16 %v32
    %v65 = vunpack.c.l.b16 %v33
    %v66 = vunpack.c.l.b16 %v34
    %v67 = vunpack.c.l.b16 %v35
    %v68 = vunpack.c.l.b16 %v36
    %v69 = vunpack.c.l.b16 %v37
    %v70 = vunpack.c.l.b16 %v38
    %v71 = vunpack.c.l.b16 %v39
    %v72 = vunpack.c.l.b16 %v40
    %v73 = vunpack.c.l.b16 %v41
    %v74 = vpack.c.b16 %v59, %v58
    %v75 = vpack.c.b16 %v61, %v60
    %v76 = vpack.c.b16 %v63, %v62
    %v77 = vpack.c.b16 %v65, %v64
    %v78 = vpack.c.b16 %v67, %v66
    %v79 = vpack.c.b16 %v69, %v68
    %v80 = vpack.c.b16 %v71, %v70
    %v81 = vpack.c.b16 %v73, %v72
    %90 = vmatprep.subr.bf16.mxu0 0
    %91 = vmatpush1.bf16.msra.mxu0 %v81
    %92 = vmatprep.subr.bf16.mxu0 0
    %93 = vmatpush1.bf16.msra.mxu0 %v80
    %94 = vmatprep.subr.bf16.mxu0 0
    %95 = vmatpush1.bf16.msra.mxu0 %v79
    %96 = vmatprep.subr.bf16.mxu0 0
    %97 = vmatpush1.bf16.msra.mxu0 %v78
    %98 = vmatprep.subr.bf16.mxu0 0
    %99 = vmatpush1.bf16.msra.mxu0 %v77
    %100 = vmatprep.subr.bf16.mxu0 0
    %101 = vmatpush1.bf16.msra.mxu0 %v76
    %102 = vmatprep.subr.bf16.mxu0 0
    %103 = vmatpush1.bf16.msra.mxu0 %v75
    %104 = vmatprep.subr.bf16.mxu0 0
    %105 = vmatpush1.bf16.msra.mxu0 %v74
    %106 = vmatprep.subr.bf16.mxu0 0
    %107 = vmatpush2.bf16.msra.mxu0 0
    %108 = vmatprep.subr.bf16.mxu0 0
    %109 = vmatpush2.bf16.msra.mxu0 0
    %110 = vmatprep.subr.bf16.mxu0 0
    %111 = vmatpush2.bf16.msra.mxu0 0
    %112 = vmatprep.subr.bf16.mxu0 0
    %113 = vmatpush2.bf16.msra.mxu0 0
    %114 = vmatprep.subr.bf16.mxu0 0
    %115 = vmatpush2.bf16.msra.mxu0 0
    %116 = vmatprep.subr.bf16.mxu0 0
    %117 = vmatpush2.bf16.msra.mxu0 0
    %118 = vmatprep.subr.bf16.mxu0 0
    %119 = vmatpush2.bf16.msra.mxu0 0
    %120 = vmatprep.subr.bf16.mxu0 0
    %121 = vmatpush2.bf16.msra.mxu0 0
    %122 = vmatprep.mubr.bf16.mxu0 0
    %123 = vmatmul.mubr.bf16.gmra.mxu0 %v25
    %v124 = vpop.f32.mrf.mxu0
    %v125 = vadd.f32 0.0, %v124
    %v126 = vpop.f32.mrf.mxu0
    %v127 = vpop.f32.mrf.mxu0
    %v128 = vpop.f32.mrf.mxu0
    %129 = vdwg.mxu0
    %v130 = vadd.f32 %v24, %v125
    %131 = vst [vmem:[#allocation2] sm:$0xff] %v130
    // Predicated region
    $region22: #{gcn_forward.5} parent=1 // pred_check
      %p132 = pneg %p19
    $region23: #{gcn_forward.5} parent=1 // pred_check_branch
      %134 = sbr.rel (%p132) target = $region25
    $region24: #{gcn_forward.5} parent=1 // pred_region
      %v135 = vld [vmem:[#allocation2] sm:$0xff]
      %v136 = vpack.c.bf16 %v135, %v135
      %v137 = vld [vmem:[%s2] sm:$0xf]
      %v138 = vld [vmem:[%s2 + $0x4] sm:$0xf]
      %v139 = vld [vmem:[%s2 + $0x8] sm:$0xf]
      %v140 = vld [vmem:[%s2 + $0xc] sm:$0xf]
      %v141 = vld [vmem:[%s2 + $0x10] sm:$0xf]
      %v142 = vld [vmem:[%s2 + $0x14] sm:$0xf]
      %v143 = vld [vmem:[%s2 + $0x18] sm:$0xf]
      %v144 = vld [vmem:[%s2 + $0x1c] sm:$0xf]
      %v145 = vld [vmem:[%s2 + $0x20] sm:$0xf]
      %v146 = vld [vmem:[%s2 + $0x24] sm:$0xf]
      %v147 = vld [vmem:[%s2 + $0x28] sm:$0xf]
      %v148 = vld [vmem:[%s2 + $0x2c] sm:$0xf]
      %v149 = vld [vmem:[%s2 + $0x30] sm:$0xf]
      %v150 = vld [vmem:[%s2 + $0x34] sm:$0xf]
      %v151 = vld [vmem:[%s2 + $0x38] sm:$0xf]
      %v152 = vld [vmem:[%s2 + $0x3c] sm:$0xf]
      %v153 = vld [vmem:[%s3] sm:$0x1]
      %v155 = vlaneseq
      %v156 = vshrl.u32 %v155, 7
      %v157 = vsub.s32 0, %v156
      %v158 = vrot.slane %v153, %v157
      %v176 = vunpack.c.l.b16 %v137
      %v177 = vunpack.c.l.b16 %v138
      %v178 = vunpack.c.l.b16 %v139
      %v179 = vunpack.c.l.b16 %v140
      %v180 = vunpack.c.l.b16 %v141
      %v181 = vunpack.c.l.b16 %v142
      %v182 = vunpack.c.l.b16 %v143
      %v183 = vunpack.c.l.b16 %v144
      %v184 = vunpack.c.l.b16 %v145
      %v185 = vunpack.c.l.b16 %v146
      %v186 = vunpack.c.l.b16 %v147
      %v187 = vunpack.c.l.b16 %v148
      %v188 = vunpack.c.l.b16 %v149
      %v189 = vunpack.c.l.b16 %v150
      %v190 = vunpack.c.l.b16 %v151
      %v191 = vunpack.c.l.b16 %v152
      %v192 = vpack.c.b16 %v177, %v176
      %v193 = vpack.c.b16 %v179, %v178
      %v194 = vpack.c.b16 %v181, %v180
      %v195 = vpack.c.b16 %v183, %v182
      %v196 = vpack.c.b16 %v185, %v184
      %v197 = vpack.c.b16 %v187, %v186
      %v198 = vpack.c.b16 %v189, %v188
      %v199 = vpack.c.b16 %v191, %v190
      %208 = vmatprep.subr.bf16.mxu0 0
      %209 = vmatpush1.bf16.msra.mxu0 %v199
      %210 = vmatprep.subr.bf16.mxu0 0
      %211 = vmatpush1.bf16.msra.mxu0 %v198
      %212 = vmatprep.subr.bf16.mxu0 0
      %213 = vmatpush1.bf16.msra.mxu0 %v197
      %214 = vmatprep.subr.bf16.mxu0 0
      %215 = vmatpush1.bf16.msra.mxu0 %v196
      %216 = vmatprep.subr.bf16.mxu0 0
      %217 = vmatpush1.bf16.msra.mxu0 %v195
      %218 = vmatprep.subr.bf16.mxu0 0
      %219 = vmatpush1.bf16.msra.mxu0 %v194
      %220 = vmatprep.subr.bf16.mxu0 0
      %221 = vmatpush1.bf16.msra.mxu0 %v193
      %222 = vmatprep.subr.bf16.mxu0 0
      %223 = vmatpush1.bf16.msra.mxu0 %v192
      %224 = vmatprep.subr.bf16.mxu0 0
      %225 = vmatpush2.bf16.msra.mxu0 0
      %226 = vmatprep.subr.bf16.mxu0 0
      %227 = vmatpush2.bf16.msra.mxu0 0
      %228 = vmatprep.subr.bf16.mxu0 0
      %229 = vmatpush2.bf16.msra.mxu0 0
      %230 = vmatprep.subr.bf16.mxu0 0
      %231 = vmatpush2.bf16.msra.mxu0 0
      %232 = vmatprep.subr.bf16.mxu0 0
      %233 = vmatpush2.bf16.msra.mxu0 0
      %234 = vmatprep.subr.bf16.mxu0 0
      %235 = vmatpush2.bf16.msra.mxu0 0
      %236 = vmatprep.subr.bf16.mxu0 0
      %237 = vmatpush2.bf16.msra.mxu0 0
      %238 = vmatprep.subr.bf16.mxu0 0
      %239 = vmatpush2.bf16.msra.mxu0 0
      %240 = vmatprep.mubr.bf16.mxu0 0
      %241 = vmatmul.mubr.bf16.gmra.mxu0 %v136
      %v242 = vpop.f32.mrf.mxu0
      %v243 = vadd.f32 %v158, %v242
      %v244 = vpop.f32.mrf.mxu0
      %v245 = vpop.f32.mrf.mxu0
      %v246 = vpop.f32.mrf.mxu0
      %247 = vdwg.mxu0
      %248 = vst [vmem:[#allocation3] sm:$0xff] %v243
    $region25: #{gcn_forward.5} parent=1 // pred_fallthru
      _
    // Predicated region
    $region26: #{gcn_forward.5} parent=1 // pred_check
      _
    $region27: #{gcn_forward.5} parent=1 // pred_check_branch
      %250 = sbr.rel (0) target = $region29
    $region28: #{gcn_forward.5} parent=1 // pred_region
      %s252 = ssub.s32 128, 128
      %253 = vsyncadd [#allocation4], %s252
      %s255 = sshll.u32 [#allocation3], 4
      %s256 = int_to_ptr.vmem [resolvable:$true] %s255
      %258 = dma.vmem_to_hbm [thread:$0]  %s256, 128, %s4, [#allocation4]
    $region29: #{gcn_forward.5} parent=1 // pred_fallthru
      _
    // Predicated region
    $region30: #{gcn_forward.5} parent=1 // pred_check
      _
    $region31: #{gcn_forward.5} parent=1 // pred_check_branch
      %260 = sbr.rel (0) target = $region33
    $region32: #{gcn_forward.5} parent=1 // pred_region
      %261 = dma.done [#allocation4], 128
    $region33: #{gcn_forward.5} parent=1 // pred_fallthru
      _
    %262 = vsyncpa [#allocation4], 1

// kernel: gcn_forward.3
$region0: #{gcn_forward.3}
  #allocation0 [shape = 'u32[]', space=smem, size = 0x4, offset = 0x4, fixed_abs, tag = 'smem constant byte address 0x4 - core index']
  #allocation1 [shape = 'u32[144,128]{1,0:T(1,128)}', space=vmem, size = 0x12000, scoped, tag = 'internal scratch']
  #allocation2 [shape = 'f32[128,128]{1,0:T(8,128)}', space=vmem, size = 0x10000, scoped, tag = 'scratch operand']
  %s0 = inlined_call_operand.vmem [shape: bf16[128,128], index: 0, kind: input, shape index: {}]
  %s1 = inlined_call_operand.vmem [shape: bf16[128,128], index: 1, kind: input, shape index: {}]
  %s2 = inlined_call_operand.vmem [shape: f32[1,128], index: 2, kind: input, shape index: {}]
  %s3 = inlined_call_operand.vmem [shape: bf16[128,128], index: 3, kind: output, shape index: {}]
  %s4 = sld [smem:[#allocation0]]
  $region30: #{gcn_forward.3} parent=0
    _
  %s6 = ssub.s32 1, %s4
  %s7 = scalar_select 0, %s6, %s4
  // Predicated region
  $region2: #{gcn_forward.3} parent=0 // pred_check
    _
  $region3: #{gcn_forward.3} parent=0 // pred_check_branch
    %9 = sbr.rel (0) target = $region5
  $region4: #{gcn_forward.3} parent=0 // pred_region
    _
  $region5: #{gcn_forward.3} parent=0 // pred_fallthru
    _
  // Predicated region
  $region6: #{gcn_forward.3} parent=0 // pred_check
    _
  $region7: #{gcn_forward.3} parent=0 // pred_check_branch
    %11 = sbr.rel (0) target = $region9
  $region8: #{gcn_forward.3} parent=0 // pred_region
    _
  $region9: #{gcn_forward.3} parent=0 // pred_fallthru
    _
  // Predicated region
  $region10: #{gcn_forward.3} parent=0 // pred_check
    _
  $region11: #{gcn_forward.3} parent=0 // pred_check_branch
    %13 = sbr.rel (0) target = $region13
  $region12: #{gcn_forward.3} parent=0 // pred_region
    _
  $region13: #{gcn_forward.3} parent=0 // pred_fallthru
    _
  %p15 = scmp.eq.s32.totalorder 0, 0
  // Predicated region
  $region14: #{gcn_forward.3} parent=0 // pred_check
    %p16 = pneg %p15
  $region15: #{gcn_forward.3} parent=0 // pred_check_branch
    %18 = sbr.rel (%p16) target = $region17
  $region16: #{gcn_forward.3} parent=0 // pred_region
    %19 = vst [vmem:[#allocation2] sm:$0xff] 0.0
    %20 = vst [vmem:[#allocation2 + $0x8] sm:$0xff] 0.0
    %21 = vst [vmem:[#allocation2 + $0x10] sm:$0xff] 0.0
    %22 = vst [vmem:[#allocation2 + $0x18] sm:$0xff] 0.0
    %23 = vst [vmem:[#allocation2 + $0x20] sm:$0xff] 0.0
    %24 = vst [vmem:[#allocation2 + $0x28] sm:$0xff] 0.0
    %25 = vst [vmem:[#allocation2 + $0x30] sm:$0xff] 0.0
    %26 = vst [vmem:[#allocation2 + $0x38] sm:$0xff] 0.0
    %27 = vst [vmem:[#allocation2 + $0x40] sm:$0xff] 0.0
    %28 = vst [vmem:[#allocation2 + $0x48] sm:$0xff] 0.0
    %29 = vst [vmem:[#allocation2 + $0x50] sm:$0xff] 0.0
    %30 = vst [vmem:[#allocation2 + $0x58] sm:$0xff] 0.0
    %31 = vst [vmem:[#allocation2 + $0x60] sm:$0xff] 0.0
    %32 = vst [vmem:[#allocation2 + $0x68] sm:$0xff] 0.0
    %33 = vst [vmem:[#allocation2 + $0x70] sm:$0xff] 0.0
    %34 = vst [vmem:[#allocation2 + $0x78] sm:$0xff] 0.0
  $region17: #{gcn_forward.3} parent=0 // pred_fallthru
    _
  %v35 = vld [vmem:[#allocation2] sm:$0xff]
  %v36 = vld [vmem:[#allocation2 + $0x8] sm:$0xff]
  %v37 = vld [vmem:[#allocation2 + $0x10] sm:$0xff]
  %v38 = vld [vmem:[#allocation2 + $0x18] sm:$0xff]
  %v39 = vld [vmem:[#allocation2 + $0x20] sm:$0xff]
  %v40 = vld [vmem:[#allocation2 + $0x28] sm:$0xff]
  %v41 = vld [vmem:[#allocation2 + $0x30] sm:$0xff]
  %v42 = vld [vmem:[#allocation2 + $0x38] sm:$0xff]
  %v43 = vld [vmem:[#allocation2 + $0x40] sm:$0xff]
  %v44 = vld [vmem:[#allocation2 + $0x48] sm:$0xff]
  %v45 = vld [vmem:[#allocation2 + $0x50] sm:$0xff]
  %v46 = vld [vmem:[#allocation2 + $0x58] sm:$0xff]
  %v47 = vld [vmem:[#allocation2 + $0x60] sm:$0xff]
  %v48 = vld [vmem:[#allocation2 + $0x68] sm:$0xff]
  %v49 = vld [vmem:[#allocation2 + $0x70] sm:$0xff]
  %v50 = vld [vmem:[#allocation2 + $0x78] sm:$0xff]
  %v51 = vld [vmem:[%s0] sm:$0xf]
  %v52 = vld [vmem:[%s0 + $0x4] sm:$0xf]
  %v53 = vld [vmem:[%s0 + $0x8] sm:$0xf]
  %v54 = vld [vmem:[%s0 + $0xc] sm:$0xf]
  %v55 = vld [vmem:[%s0 + $0x10] sm:$0xf]
  %v56 = vld [vmem:[%s0 + $0x14] sm:$0xf]
  %v57 = vld [vmem:[%s0 + $0x18] sm:$0xf]
  %v58 = vld [vmem:[%s0 + $0x1c] sm:$0xf]
  %v59 = vld [vmem:[%s0 + $0x20] sm:$0xf]
  %v60 = vld [vmem:[%s0 + $0x24] sm:$0xf]
  %v61 = vld [vmem:[%s0 + $0x28] sm:$0xf]
  %v62 = vld [vmem:[%s0 + $0x2c] sm:$0xf]
  %v63 = vld [vmem:[%s0 + $0x30] sm:$0xf]
  %v64 = vld [vmem:[%s0 + $0x34] sm:$0xf]
  %v65 = vld [vmem:[%s0 + $0x38] sm:$0xf]
  %v66 = vld [vmem:[%s0 + $0x3c] sm:$0xf]
  %v67 = vld [vmem:[%s1] sm:$0xf]
  %v68 = vld [vmem:[%s1 + $0x4] sm:$0xf]
  %v69 = vld [vmem:[%s1 + $0x8] sm:$0xf]
  %v70 = vld [vmem:[%s1 + $0xc] sm:$0xf]
  %v71 = vld [vmem:[%s1 + $0x10] sm:$0xf]
  %v72 = vld [vmem:[%s1 + $0x14] sm:$0xf]
  %v73 = vld [vmem:[%s1 + $0x18] sm:$0xf]
  %v74 = vld [vmem:[%s1 + $0x1c] sm:$0xf]
  %v75 = vld [vmem:[%s1 + $0x20] sm:$0xf]
  %v76 = vld [vmem:[%s1 + $0x24] sm:$0xf]
  %v77 = vld [vmem:[%s1 + $0x28] sm:$0xf]
  %v78 = vld [vmem:[%s1 + $0x2c] sm:$0xf]
  %v79 = vld [vmem:[%s1 + $0x30] sm:$0xf]
  %v80 = vld [vmem:[%s1 + $0x34] sm:$0xf]
  %v81 = vld [vmem:[%s1 + $0x38] sm:$0xf]
  %v82 = vld [vmem:[%s1 + $0x3c] sm:$0xf]
  %v99 = vunpack.c.l.b16 %v51
  %v100 = vunpack.c.l.b16 %v52
  %v101 = vunpack.c.l.b16 %v53
  %v102 = vunpack.c.l.b16 %v54
  %v103 = vunpack.c.l.b16 %v55
  %v104 = vunpack.c.l.b16 %v56
  %v105 = vunpack.c.l.b16 %v57
  %v106 = vunpack.c.l.b16 %v58
  %v107 = vunpack.c.l.b16 %v59
  %v108 = vunpack.c.l.b16 %v60
  %v109 = vunpack.c.l.b16 %v61
  %v110 = vunpack.c.l.b16 %v62
  %v111 = vunpack.c.l.b16 %v63
  %v112 = vunpack.c.l.b16 %v64
  %v113 = vunpack.c.l.b16 %v65
  %v114 = vunpack.c.l.b16 %v66
  %v115 = vpack.c.b16 %v100, %v99
  %v116 = vpack.c.b16 %v102, %v101
  %v117 = vpack.c.b16 %v104, %v103
  %v118 = vpack.c.b16 %v106, %v105
  %v119 = vpack.c.b16 %v108, %v107
  %v120 = vpack.c.b16 %v110, %v109
  %v121 = vpack.c.b16 %v112, %v111
  %v122 = vpack.c.b16 %v114, %v113
  %v147 = vunpack.c.l.b16 %v67
  %v148 = vunpack.c.l.b16 %v68
  %v149 = vunpack.c.l.b16 %v69
  %v150 = vunpack.c.l.b16 %v70
  %v151 = vunpack.c.l.b16 %v71
  %v152 = vunpack.c.l.b16 %v72
  %v153 = vunpack.c.l.b16 %v73
  %v154 = vunpack.c.l.b16 %v74
  %v155 = vunpack.c.l.b16 %v75
  %v156 = vunpack.c.l.b16 %v76
  %v157 = vunpack.c.l.b16 %v77
  %v158 = vunpack.c.l.b16 %v78
  %v159 = vunpack.c.l.b16 %v79
  %v160 = vunpack.c.l.b16 %v80
  %v161 = vunpack.c.l.b16 %v81
  %v162 = vunpack.c.l.b16 %v82
  %v163 = vpack.c.b16 %v148, %v147
  %v164 = vpack.c.b16 %v150, %v149
  %v165 = vpack.c.b16 %v152, %v151
  %v166 = vpack.c.b16 %v154, %v153
  %v167 = vpack.c.b16 %v156, %v155
  %v168 = vpack.c.b16 %v158, %v157
  %v169 = vpack.c.b16 %v160, %v159
  %v170 = vpack.c.b16 %v162, %v161
  %179 = vmatprep.subr.bf16.mxu0 0
  %180 = vmatpush1.bf16.msra.mxu0 %v170
  %181 = vmatprep.subr.bf16.mxu0 0
  %182 = vmatpush1.bf16.msra.mxu0 %v169
  %183 = vmatprep.subr.bf16.mxu0 0
  %184 = vmatpush1.bf16.msra.mxu0 %v168
  %185 = vmatprep.subr.bf16.mxu0 0
  %186 = vmatpush1.bf16.msra.mxu0 %v167
  %187 = vmatprep.subr.bf16.mxu0 0
  %188 = vmatpush1.bf16.msra.mxu0 %v166
  %189 = vmatprep.subr.bf16.mxu0 0
  %190 = vmatpush1.bf16.msra.mxu0 %v165
  %191 = vmatprep.subr.bf16.mxu0 0
  %192 = vmatpush1.bf16.msra.mxu0 %v164
  %193 = vmatprep.subr.bf16.mxu0 0
  %194 = vmatpush1.bf16.msra.mxu0 %v163
  %195 = vmatprep.subr.bf16.mxu0 0
  %196 = vmatpush2.bf16.msra.mxu0 0
  %197 = vmatprep.subr.bf16.mxu0 0
  %198 = vmatpush2.bf16.msra.mxu0 0
  %199 = vmatprep.subr.bf16.mxu0 0
  %200 = vmatpush2.bf16.msra.mxu0 0
  %201 = vmatprep.subr.bf16.mxu0 0
  %202 = vmatpush2.bf16.msra.mxu0 0
  %203 = vmatprep.subr.bf16.mxu0 0
  %204 = vmatpush2.bf16.msra.mxu0 0
  %205 = vmatprep.subr.bf16.mxu0 0
  %206 = vmatpush2.bf16.msra.mxu0 0
  %207 = vmatprep.subr.bf16.mxu0 0
  %208 = vmatpush2.bf16.msra.mxu0 0
  %209 = vmatprep.subr.bf16.mxu0 0
  %210 = vmatpush2.bf16.msra.mxu0 0
  %211 = vmatprep.mubr.bf16.mxu0 0
  %212 = vmatmul.mubr.bf16.gmra.mxu0 %v115
  %v213 = vpop.f32.mrf.mxu0
  %v214 = vadd.f32 0.0, %v213
  %v215 = vpop.f32.mrf.mxu0
  %v216 = vpop.f32.mrf.mxu0
  %v217 = vadd.f32 0.0, %v216
  %v218 = vpop.f32.mrf.mxu0
  %219 = vmatprep.mubr.bf16.mxu0 0
  %220 = vmatmul.mubr.bf16.gmra.mxu0 %v116
  %v221 = vpop.f32.mrf.mxu0
  %v222 = vadd.f32 0.0, %v221
  %v223 = vpop.f32.mrf.mxu0
  %v224 = vpop.f32.mrf.mxu0
  %v225 = vadd.f32 0.0, %v224
  %v226 = vpop.f32.mrf.mxu0
  %227 = vmatprep.mubr.bf16.mxu0 0
  %228 = vmatmul.mubr.bf16.gmra.mxu0 %v117
  %v229 = vpop.f32.mrf.mxu0
  %v230 = vadd.f32 0.0, %v229
  %v231 = vpop.f32.mrf.mxu0
  %v232 = vpop.f32.mrf.mxu0
  %v233 = vadd.f32 0.0, %v232
  %v234 = vpop.f32.mrf.mxu0
  %235 = vmatprep.mubr.bf16.mxu0 0
  %236 = vmatmul.mubr.bf16.gmra.mxu0 %v118
  %v237 = vpop.f32.mrf.mxu0
  %v238 = vadd.f32 0.0, %v237
  %v239 = vpop.f32.mrf.mxu0
  %v240 = vpop.f32.mrf.mxu0
  %v241 = vadd.f32 0.0, %v240
  %v242 = vpop.f32.mrf.mxu0
  %243 = vmatprep.mubr.bf16.mxu0 0
  %244 = vmatmul.mubr.bf16.gmra.mxu0 %v119
  %v245 = vpop.f32.mrf.mxu0
  %v246 = vadd.f32 0.0, %v245
  %v247 = vpop.f32.mrf.mxu0
  %v248 = vpop.f32.mrf.mxu0
  %v249 = vadd.f32 0.0, %v248
  %v250 = vpop.f32.mrf.mxu0
  %251 = vmatprep.mubr.bf16.mxu0 0
  %252 = vmatmul.mubr.bf16.gmra.mxu0 %v120
  %v253 = vpop.f32.mrf.mxu0
  %v254 = vadd.f32 0.0, %v253
  %v255 = vpop.f32.mrf.mxu0
  %v256 = vpop.f32.mrf.mxu0
  %v257 = vadd.f32 0.0, %v256
  %v258 = vpop.f32.mrf.mxu0
  %259 = vmatprep.mubr.bf16.mxu0 0
  %260 = vmatmul.mubr.bf16.gmra.mxu0 %v121
  %v261 = vpop.f32.mrf.mxu0
  %v262 = vadd.f32 0.0, %v261
  %v263 = vpop.f32.mrf.mxu0
  %v264 = vpop.f32.mrf.mxu0
  %v265 = vadd.f32 0.0, %v264
  %v266 = vpop.f32.mrf.mxu0
  %267 = vmatprep.mubr.bf16.mxu0 0
  %268 = vmatmul.mubr.bf16.gmra.mxu0 %v122
  %v269 = vpop.f32.mrf.mxu0
  %v270 = vadd.f32 0.0, %v269
  %v271 = vpop.f32.mrf.mxu0
  %v272 = vpop.f32.mrf.mxu0
  %v273 = vadd.f32 0.0, %v272
  %v274 = vpop.f32.mrf.mxu0
  %275 = vdwg.mxu0
  %v276 = vadd.f32 %v35, %v214
  %v277 = vadd.f32 %v36, %v217
  %v278 = vadd.f32 %v37, %v222
  %v279 = vadd.f32 %v38, %v225
  %v280 = vadd.f32 %v39, %v230
  %v281 = vadd.f32 %v40, %v233
  %v282 = vadd.f32 %v41, %v238
  %v283 = vadd.f32 %v42, %v241
  %v284 = vadd.f32 %v43, %v246
  %v285 = vadd.f32 %v44, %v249
  %v286 = vadd.f32 %v45, %v254
  %v287 = vadd.f32 %v46, %v257
  %v288 = vadd.f32 %v47, %v262
  %v289 = vadd.f32 %v48, %v265
  %v290 = vadd.f32 %v49, %v270
  %v291 = vadd.f32 %v50, %v273
  %292 = vst [vmem:[#allocation2] sm:$0xff] %v276
  %293 = vst [vmem:[#allocation2 + $0x8] sm:$0xff] %v277
  %294 = vst [vmem:[#allocation2 + $0x10] sm:$0xff] %v278
  %295 = vst [vmem:[#allocation2 + $0x18] sm:$0xff] %v279
  %296 = vst [vmem:[#allocation2 + $0x20] sm:$0xff] %v280
  %297 = vst [vmem:[#allocation2 + $0x28] sm:$0xff] %v281
  %298 = vst [vmem:[#allocation2 + $0x30] sm:$0xff] %v282
  %299 = vst [vmem:[#allocation2 + $0x38] sm:$0xff] %v283
  %300 = vst [vmem:[#allocation2 + $0x40] sm:$0xff] %v284
  %301 = vst [vmem:[#allocation2 + $0x48] sm:$0xff] %v285
  %302 = vst [vmem:[#allocation2 + $0x50] sm:$0xff] %v286
  %303 = vst [vmem:[#allocation2 + $0x58] sm:$0xff] %v287
  %304 = vst [vmem:[#allocation2 + $0x60] sm:$0xff] %v288
  %305 = vst [vmem:[#allocation2 + $0x68] sm:$0xff] %v289
  %306 = vst [vmem:[#allocation2 + $0x70] sm:$0xff] %v290
  %307 = vst [vmem:[#allocation2 + $0x78] sm:$0xff] %v291
  // Predicated region
  $region18: #{gcn_forward.3} parent=0 // pred_check
    %p308 = pneg %p15
  $region19: #{gcn_forward.3} parent=0 // pred_check_branch
    %310 = sbr.rel (%p308) target = $region21
  $region20: #{gcn_forward.3} parent=0 // pred_region
    %v311 = vld [vmem:[#allocation2] sm:$0xff]
    %v312 = vld [vmem:[#allocation2 + $0x8] sm:$0xff]
    %v313 = vld [vmem:[#allocation2 + $0x10] sm:$0xff]
    %v314 = vld [vmem:[#allocation2 + $0x18] sm:$0xff]
    %v315 = vld [vmem:[#allocation2 + $0x20] sm:$0xff]
    %v316 = vld [vmem:[#allocation2 + $0x28] sm:$0xff]
    %v317 = vld [vmem:[#allocation2 + $0x30] sm:$0xff]
    %v318 = vld [vmem:[#allocation2 + $0x38] sm:$0xff]
    %v319 = vld [vmem:[#allocation2 + $0x40] sm:$0xff]
    %v320 = vld [vmem:[#allocation2 + $0x48] sm:$0xff]
    %v321 = vld [vmem:[#allocation2 + $0x50] sm:$0xff]
    %v322 = vld [vmem:[#allocation2 + $0x58] sm:$0xff]
    %v323 = vld [vmem:[#allocation2 + $0x60] sm:$0xff]
    %v324 = vld [vmem:[#allocation2 + $0x68] sm:$0xff]
    %v325 = vld [vmem:[#allocation2 + $0x70] sm:$0xff]
    %v326 = vld [vmem:[#allocation2 + $0x78] sm:$0xff]
    %v327 = vld [vmem:[%s2] sm:$0x1]
    %v329 = vlaneseq
    %v330 = vshrl.u32 %v329, 7
    %v331 = vsub.s32 0, %v330
    %v332 = vrot.slane %v327, %v331
    %v334 = vadd.f32 %v311, %v332
    %v335 = vadd.f32 %v312, %v332
    %v336 = vadd.f32 %v313, %v332
    %v337 = vadd.f32 %v314, %v332
    %v338 = vadd.f32 %v315, %v332
    %v339 = vadd.f32 %v316, %v332
    %v340 = vadd.f32 %v317, %v332
    %v341 = vadd.f32 %v318, %v332
    %v342 = vadd.f32 %v319, %v332
    %v343 = vadd.f32 %v320, %v332
    %v344 = vadd.f32 %v321, %v332
    %v345 = vadd.f32 %v322, %v332
    %v346 = vadd.f32 %v323, %v332
    %v347 = vadd.f32 %v324, %v332
    %v348 = vadd.f32 %v325, %v332
    %v349 = vadd.f32 %v326, %v332
    %v350 = vmax.f32 %v334, 0.0
    %v351 = vmax.f32 %v335, 0.0
    %v352 = vmax.f32 %v336, 0.0
    %v353 = vmax.f32 %v337, 0.0
    %v354 = vmax.f32 %v338, 0.0
    %v355 = vmax.f32 %v339, 0.0
    %v356 = vmax.f32 %v340, 0.0
    %v357 = vmax.f32 %v341, 0.0
    %v358 = vmax.f32 %v342, 0.0
    %v359 = vmax.f32 %v343, 0.0
    %v360 = vmax.f32 %v344, 0.0
    %v361 = vmax.f32 %v345, 0.0
    %v362 = vmax.f32 %v346, 0.0
    %v363 = vmax.f32 %v347, 0.0
    %v364 = vmax.f32 %v348, 0.0
    %v365 = vmax.f32 %v349, 0.0
    %v366 = vpack.c.bf16 %v351, %v350
    %v367 = vpack.c.bf16 %v353, %v352
    %v368 = vpack.c.bf16 %v355, %v354
    %v369 = vpack.c.bf16 %v357, %v356
    %v370 = vpack.c.bf16 %v359, %v358
    %v371 = vpack.c.bf16 %v361, %v360
    %v372 = vpack.c.bf16 %v363, %v362
    %v373 = vpack.c.bf16 %v365, %v364
    %v382 = vunpack.c.l.b16 %v366
    %v383 = vunpack.c.h.b16 %v366
    %v384 = vunpack.c.l.b16 %v367
    %v385 = vunpack.c.h.b16 %v367
    %v386 = vunpack.c.l.b16 %v368
    %v387 = vunpack.c.h.b16 %v368
    %v388 = vunpack.c.l.b16 %v369
    %v389 = vunpack.c.h.b16 %v369
    %v390 = vunpack.c.l.b16 %v370
    %v391 = vunpack.c.h.b16 %v370
    %v392 = vunpack.c.l.b16 %v371
    %v393 = vunpack.c.h.b16 %v371
    %v394 = vunpack.c.l.b16 %v372
    %v395 = vunpack.c.h.b16 %v372
    %v396 = vunpack.c.l.b16 %v373
    %v397 = vunpack.c.h.b16 %v373
    %v398 = vpack.c.b16 %v382, %v382
    %v399 = vpack.c.b16 %v383, %v383
    %v400 = vpack.c.b16 %v384, %v384
    %v401 = vpack.c.b16 %v385, %v385
    %v402 = vpack.c.b16 %v386, %v386
    %v403 = vpack.c.b16 %v387, %v387
    %v404 = vpack.c.b16 %v388, %v388
    %v405 = vpack.c.b16 %v389, %v389
    %v406 = vpack.c.b16 %v390, %v390
    %v407 = vpack.c.b16 %v391, %v391
    %v408 = vpack.c.b16 %v392, %v392
    %v409 = vpack.c.b16 %v393, %v393
    %v410 = vpack.c.b16 %v394, %v394
    %v411 = vpack.c.b16 %v395, %v395
    %v412 = vpack.c.b16 %v396, %v396
    %v413 = vpack.c.b16 %v397, %v397
    %430 = vst [vmem:[%s3] sm:$0xf] %v398
    %431 = vst [vmem:[%s3 + $0x4] sm:$0xf] %v399
    %432 = vst [vmem:[%s3 + $0x8] sm:$0xf] %v400
    %433 = vst [vmem:[%s3 + $0xc] sm:$0xf] %v401
    %434 = vst [vmem:[%s3 + $0x10] sm:$0xf] %v402
    %435 = vst [vmem:[%s3 + $0x14] sm:$0xf] %v403
    %436 = vst [vmem:[%s3 + $0x18] sm:$0xf] %v404
    %437 = vst [vmem:[%s3 + $0x1c] sm:$0xf] %v405
    %438 = vst [vmem:[%s3 + $0x20] sm:$0xf] %v406
    %439 = vst [vmem:[%s3 + $0x24] sm:$0xf] %v407
    %440 = vst [vmem:[%s3 + $0x28] sm:$0xf] %v408
    %441 = vst [vmem:[%s3 + $0x2c] sm:$0xf] %v409
    %442 = vst [vmem:[%s3 + $0x30] sm:$0xf] %v410
    %443 = vst [vmem:[%s3 + $0x34] sm:$0xf] %v411
    %444 = vst [vmem:[%s3 + $0x38] sm:$0xf] %v412
    %445 = vst [vmem:[%s3 + $0x3c] sm:$0xf] %v413
  $region21: #{gcn_forward.3} parent=0 // pred_fallthru
    _
  // Predicated region
  $region22: #{gcn_forward.3} parent=0 // pred_check
    _
  $region23: #{gcn_forward.3} parent=0 // pred_check_branch
    %447 = sbr.rel (0) target = $region25
  $region24: #{gcn_forward.3} parent=0 // pred_region
    _
  $region25: #{gcn_forward.3} parent=0 // pred_fallthru
    _
  // Predicated region
  $region26: #{gcn_forward.3} parent=0 // pred_check
    _
  $region27: #{gcn_forward.3} parent=0 // pred_check_branch
    %449 = sbr.rel (0) target = $region29
  $region28: #{gcn_forward.3} parent=0 // pred_region
    _
  $region29: #{gcn_forward.3} parent=0 // pred_fallthru
    _

// kernel: gcn_forward.4
$region0: #{gcn_forward.4}
  #allocation0 [shape = 'u32[]', space=smem, size = 0x4, offset = 0x4, fixed_abs, tag = 'smem constant byte address 0x4 - core index']
  #allocation1 [shape = 'u32[144,128]{1,0:T(1,128)}', space=vmem, size = 0x12000, scoped, tag = 'internal scratch']
  #allocation2 [shape = 'f32[128,128]{1,0:T(8,128)}', space=vmem, size = 0x10000, scoped, tag = 'scratch operand']
  %s0 = inlined_call_operand.vmem [shape: bf16[128,128], index: 0, kind: input, shape index: {}]
  %s1 = inlined_call_operand.vmem [shape: bf16[128,128], index: 1, kind: input, shape index: {}]
  %s2 = inlined_call_operand.vmem [shape: bf16[128,128], index: 2, kind: input, shape index: {}]
  %s3 = inlined_call_operand.vmem [shape: f32[1,128], index: 3, kind: input, shape index: {}]
  %s4 = inlined_call_operand.vmem [shape: bf16[128,128], index: 4, kind: output, shape index: {}]
  %s5 = sld [smem:[#allocation0]]
  $region34: #{gcn_forward.4} parent=0
    _
  %s7 = ssub.s32 1, %s5
  %s8 = scalar_select 0, %s7, %s5
  // Predicated region
  $region2: #{gcn_forward.4} parent=0 // pred_check
    _
  $region3: #{gcn_forward.4} parent=0 // pred_check_branch
    %10 = sbr.rel (0) target = $region5
  $region4: #{gcn_forward.4} parent=0 // pred_region
    _
  $region5: #{gcn_forward.4} parent=0 // pred_fallthru
    _
  // Predicated region
  $region6: #{gcn_forward.4} parent=0 // pred_check
    _
  $region7: #{gcn_forward.4} parent=0 // pred_check_branch
    %12 = sbr.rel (0) target = $region9
  $region8: #{gcn_forward.4} parent=0 // pred_region
    _
  $region9: #{gcn_forward.4} parent=0 // pred_fallthru
    _
  // Predicated region
  $region10: #{gcn_forward.4} parent=0 // pred_check
    _
  $region11: #{gcn_forward.4} parent=0 // pred_check_branch
    %14 = sbr.rel (0) target = $region13
  $region12: #{gcn_forward.4} parent=0 // pred_region
    _
  $region13: #{gcn_forward.4} parent=0 // pred_fallthru
    _
  // Predicated region
  $region14: #{gcn_forward.4} parent=0 // pred_check
    _
  $region15: #{gcn_forward.4} parent=0 // pred_check_branch
    %16 = sbr.rel (0) target = $region17
  $region16: #{gcn_forward.4} parent=0 // pred_region
    _
  $region17: #{gcn_forward.4} parent=0 // pred_fallthru
    _
  %p18 = scmp.eq.s32.totalorder 0, 0
  // Predicated region
  $region18: #{gcn_forward.4} parent=0 // pred_check
    %p19 = pneg %p18
  $region19: #{gcn_forward.4} parent=0 // pred_check_branch
    %21 = sbr.rel (%p19) target = $region21
  $region20: #{gcn_forward.4} parent=0 // pred_region
    %22 = vst [vmem:[#allocation2] sm:$0xff] 0.0
    %23 = vst [vmem:[#allocation2 + $0x8] sm:$0xff] 0.0
    %24 = vst [vmem:[#allocation2 + $0x10] sm:$0xff] 0.0
    %25 = vst [vmem:[#allocation2 + $0x18] sm:$0xff] 0.0
    %26 = vst [vmem:[#allocation2 + $0x20] sm:$0xff] 0.0
    %27 = vst [vmem:[#allocation2 + $0x28] sm:$0xff] 0.0
    %28 = vst [vmem:[#allocation2 + $0x30] sm:$0xff] 0.0
    %29 = vst [vmem:[#allocation2 + $0x38] sm:$0xff] 0.0
    %30 = vst [vmem:[#allocation2 + $0x40] sm:$0xff] 0.0
    %31 = vst [vmem:[#allocation2 + $0x48] sm:$0xff] 0.0
    %32 = vst [vmem:[#allocation2 + $0x50] sm:$0xff] 0.0
    %33 = vst [vmem:[#allocation2 + $0x58] sm:$0xff] 0.0
    %34 = vst [vmem:[#allocation2 + $0x60] sm:$0xff] 0.0
    %35 = vst [vmem:[#allocation2 + $0x68] sm:$0xff] 0.0
    %36 = vst [vmem:[#allocation2 + $0x70] sm:$0xff] 0.0
    %37 = vst [vmem:[#allocation2 + $0x78] sm:$0xff] 0.0
  $region21: #{gcn_forward.4} parent=0 // pred_fallthru
    _
  %v38 = vld [vmem:[#allocation2] sm:$0xff]
  %v39 = vld [vmem:[#allocation2 + $0x8] sm:$0xff]
  %v40 = vld [vmem:[#allocation2 + $0x10] sm:$0xff]
  %v41 = vld [vmem:[#allocation2 + $0x18] sm:$0xff]
  %v42 = vld [vmem:[#allocation2 + $0x20] sm:$0xff]
  %v43 = vld [vmem:[#allocation2 + $0x28] sm:$0xff]
  %v44 = vld [vmem:[#allocation2 + $0x30] sm:$0xff]
  %v45 = vld [vmem:[#allocation2 + $0x38] sm:$0xff]
  %v46 = vld [vmem:[#allocation2 + $0x40] sm:$0xff]
  %v47 = vld [vmem:[#allocation2 + $0x48] sm:$0xff]
  %v48 = vld [vmem:[#allocation2 + $0x50] sm:$0xff]
  %v49 = vld [vmem:[#allocation2 + $0x58] sm:$0xff]
  %v50 = vld [vmem:[#allocation2 + $0x60] sm:$0xff]
  %v51 = vld [vmem:[#allocation2 + $0x68] sm:$0xff]
  %v52 = vld [vmem:[#allocation2 + $0x70] sm:$0xff]
  %v53 = vld [vmem:[#allocation2 + $0x78] sm:$0xff]
  %v54 = vld [vmem:[%s0] sm:$0xf]
  %v55 = vld [vmem:[%s0 + $0x4] sm:$0xf]
  %v56 = vld [vmem:[%s0 + $0x8] sm:$0xf]
  %v57 = vld [vmem:[%s0 + $0xc] sm:$0xf]
  %v58 = vld [vmem:[%s0 + $0x10] sm:$0xf]
  %v59 = vld [vmem:[%s0 + $0x14] sm:$0xf]
  %v60 = vld [vmem:[%s0 + $0x18] sm:$0xf]
  %v61 = vld [vmem:[%s0 + $0x1c] sm:$0xf]
  %v62 = vld [vmem:[%s0 + $0x20] sm:$0xf]
  %v63 = vld [vmem:[%s0 + $0x24] sm:$0xf]
  %v64 = vld [vmem:[%s0 + $0x28] sm:$0xf]
  %v65 = vld [vmem:[%s0 + $0x2c] sm:$0xf]
  %v66 = vld [vmem:[%s0 + $0x30] sm:$0xf]
  %v67 = vld [vmem:[%s0 + $0x34] sm:$0xf]
  %v68 = vld [vmem:[%s0 + $0x38] sm:$0xf]
  %v69 = vld [vmem:[%s0 + $0x3c] sm:$0xf]
  %v70 = vld [vmem:[%s1] sm:$0xf]
  %v71 = vld [vmem:[%s1 + $0x4] sm:$0xf]
  %v72 = vld [vmem:[%s1 + $0x8] sm:$0xf]
  %v73 = vld [vmem:[%s1 + $0xc] sm:$0xf]
  %v74 = vld [vmem:[%s1 + $0x10] sm:$0xf]
  %v75 = vld [vmem:[%s1 + $0x14] sm:$0xf]
  %v76 = vld [vmem:[%s1 + $0x18] sm:$0xf]
  %v77 = vld [vmem:[%s1 + $0x1c] sm:$0xf]
  %v78 = vld [vmem:[%s1 + $0x20] sm:$0xf]
  %v79 = vld [vmem:[%s1 + $0x24] sm:$0xf]
  %v80 = vld [vmem:[%s1 + $0x28] sm:$0xf]
  %v81 = vld [vmem:[%s1 + $0x2c] sm:$0xf]
  %v82 = vld [vmem:[%s1 + $0x30] sm:$0xf]
  %v83 = vld [vmem:[%s1 + $0x34] sm:$0xf]
  %v84 = vld [vmem:[%s1 + $0x38] sm:$0xf]
  %v85 = vld [vmem:[%s1 + $0x3c] sm:$0xf]
  %v102 = vunpack.c.l.b16 %v54
  %v103 = vunpack.c.l.b16 %v55
  %v104 = vunpack.c.l.b16 %v56
  %v105 = vunpack.c.l.b16 %v57
  %v106 = vunpack.c.l.b16 %v58
  %v107 = vunpack.c.l.b16 %v59
  %v108 = vunpack.c.l.b16 %v60
  %v109 = vunpack.c.l.b16 %v61
  %v110 = vunpack.c.l.b16 %v62
  %v111 = vunpack.c.l.b16 %v63
  %v112 = vunpack.c.l.b16 %v64
  %v113 = vunpack.c.l.b16 %v65
  %v114 = vunpack.c.l.b16 %v66
  %v115 = vunpack.c.l.b16 %v67
  %v116 = vunpack.c.l.b16 %v68
  %v117 = vunpack.c.l.b16 %v69
  %v118 = vpack.c.b16 %v103, %v102
  %v119 = vpack.c.b16 %v105, %v104
  %v120 = vpack.c.b16 %v107, %v106
  %v121 = vpack.c.b16 %v109, %v108
  %v122 = vpack.c.b16 %v111, %v110
  %v123 = vpack.c.b16 %v113, %v112
  %v124 = vpack.c.b16 %v115, %v114
  %v125 = vpack.c.b16 %v117, %v116
  %v150 = vunpack.c.l.b16 %v70
  %v151 = vunpack.c.l.b16 %v71
  %v152 = vunpack.c.l.b16 %v72
  %v153 = vunpack.c.l.b16 %v73
  %v154 = vunpack.c.l.b16 %v74
  %v155 = vunpack.c.l.b16 %v75
  %v156 = vunpack.c.l.b16 %v76
  %v157 = vunpack.c.l.b16 %v77
  %v158 = vunpack.c.l.b16 %v78
  %v159 = vunpack.c.l.b16 %v79
  %v160 = vunpack.c.l.b16 %v80
  %v161 = vunpack.c.l.b16 %v81
  %v162 = vunpack.c.l.b16 %v82
  %v163 = vunpack.c.l.b16 %v83
  %v164 = vunpack.c.l.b16 %v84
  %v165 = vunpack.c.l.b16 %v85
  %v166 = vpack.c.b16 %v151, %v150
  %v167 = vpack.c.b16 %v153, %v152
  %v168 = vpack.c.b16 %v155, %v154
  %v169 = vpack.c.b16 %v157, %v156
  %v170 = vpack.c.b16 %v159, %v158
  %v171 = vpack.c.b16 %v161, %v160
  %v172 = vpack.c.b16 %v163, %v162
  %v173 = vpack.c.b16 %v165, %v164
  %182 = vmatprep.subr.bf16.mxu0 0
  %183 = vmatpush1.bf16.msra.mxu0 %v173
  %184 = vmatprep.subr.bf16.mxu0 0
  %185 = vmatpush1.bf16.msra.mxu0 %v172
  %186 = vmatprep.subr.bf16.mxu0 0
  %187 = vmatpush1.bf16.msra.mxu0 %v171
  %188 = vmatprep.subr.bf16.mxu0 0
  %189 = vmatpush1.bf16.msra.mxu0 %v170
  %190 = vmatprep.subr.bf16.mxu0 0
  %191 = vmatpush1.bf16.msra.mxu0 %v169
  %192 = vmatprep.subr.bf16.mxu0 0
  %193 = vmatpush1.bf16.msra.mxu0 %v168
  %194 = vmatprep.subr.bf16.mxu0 0
  %195 = vmatpush1.bf16.msra.mxu0 %v167
  %196 = vmatprep.subr.bf16.mxu0 0
  %197 = vmatpush1.bf16.msra.mxu0 %v166
  %198 = vmatprep.subr.bf16.mxu0 0
  %199 = vmatpush2.bf16.msra.mxu0 0
  %200 = vmatprep.subr.bf16.mxu0 0
  %201 = vmatpush2.bf16.msra.mxu0 0
  %202 = vmatprep.subr.bf16.mxu0 0
  %203 = vmatpush2.bf16.msra.mxu0 0
  %204 = vmatprep.subr.bf16.mxu0 0
  %205 = vmatpush2.bf16.msra.mxu0 0
  %206 = vmatprep.subr.bf16.mxu0 0
  %207 = vmatpush2.bf16.msra.mxu0 0
  %208 = vmatprep.subr.bf16.mxu0 0
  %209 = vmatpush2.bf16.msra.mxu0 0
  %210 = vmatprep.subr.bf16.mxu0 0
  %211 = vmatpush2.bf16.msra.mxu0 0
  %212 = vmatprep.subr.bf16.mxu0 0
  %213 = vmatpush2.bf16.msra.mxu0 0
  %214 = vmatprep.mubr.bf16.mxu0 0
  %215 = vmatmul.mubr.bf16.gmra.mxu0 %v118
  %v216 = vpop.f32.mrf.mxu0
  %v217 = vadd.f32 0.0, %v216
  %v218 = vpop.f32.mrf.mxu0
  %v219 = vpop.f32.mrf.mxu0
  %v220 = vadd.f32 0.0, %v219
  %v221 = vpop.f32.mrf.mxu0
  %222 = vmatprep.mubr.bf16.mxu0 0
  %223 = vmatmul.mubr.bf16.gmra.mxu0 %v119
  %v224 = vpop.f32.mrf.mxu0
  %v225 = vadd.f32 0.0, %v224
  %v226 = vpop.f32.mrf.mxu0
  %v227 = vpop.f32.mrf.mxu0
  %v228 = vadd.f32 0.0, %v227
  %v229 = vpop.f32.mrf.mxu0
  %230 = vmatprep.mubr.bf16.mxu0 0
  %231 = vmatmul.mubr.bf16.gmra.mxu0 %v120
  %v232 = vpop.f32.mrf.mxu0
  %v233 = vadd.f32 0.0, %v232
  %v234 = vpop.f32.mrf.mxu0
  %v235 = vpop.f32.mrf.mxu0
  %v236 = vadd.f32 0.0, %v235
  %v237 = vpop.f32.mrf.mxu0
  %238 = vmatprep.mubr.bf16.mxu0 0
  %239 = vmatmul.mubr.bf16.gmra.mxu0 %v121
  %v240 = vpop.f32.mrf.mxu0
  %v241 = vadd.f32 0.0, %v240
  %v242 = vpop.f32.mrf.mxu0
  %v243 = vpop.f32.mrf.mxu0
  %v244 = vadd.f32 0.0, %v243
  %v245 = vpop.f32.mrf.mxu0
  %246 = vmatprep.mubr.bf16.mxu0 0
  %247 = vmatmul.mubr.bf16.gmra.mxu0 %v122
  %v248 = vpop.f32.mrf.mxu0
  %v249 = vadd.f32 0.0, %v248
  %v250 = vpop.f32.mrf.mxu0
  %v251 = vpop.f32.mrf.mxu0
  %v252 = vadd.f32 0.0, %v251
  %v253 = vpop.f32.mrf.mxu0
  %254 = vmatprep.mubr.bf16.mxu0 0
  %255 = vmatmul.mubr.bf16.gmra.mxu0 %v123
  %v256 = vpop.f32.mrf.mxu0
  %v257 = vadd.f32 0.0, %v256
  %v258 = vpop.f32.mrf.mxu0
  %v259 = vpop.f32.mrf.mxu0
  %v260 = vadd.f32 0.0, %v259
  %v261 = vpop.f32.mrf.mxu0
  %262 = vmatprep.mubr.bf16.mxu0 0
  %263 = vmatmul.mubr.bf16.gmra.mxu0 %v124
  %v264 = vpop.f32.mrf.mxu0
  %v265 = vadd.f32 0.0, %v264
  %v266 = vpop.f32.mrf.mxu0
  %v267 = vpop.f32.mrf.mxu0
  %v268 = vadd.f32 0.0, %v267
  %v269 = vpop.f32.mrf.mxu0
  %270 = vmatprep.mubr.bf16.mxu0 0
  %271 = vmatmul.mubr.bf16.gmra.mxu0 %v125
  %v272 = vpop.f32.mrf.mxu0
  %v273 = vadd.f32 0.0, %v272
  %v274 = vpop.f32.mrf.mxu0
  %v275 = vpop.f32.mrf.mxu0
  %v276 = vadd.f32 0.0, %v275
  %v277 = vpop.f32.mrf.mxu0
  %278 = vdwg.mxu0
  %v279 = vadd.f32 %v38, %v217
  %v280 = vadd.f32 %v39, %v220
  %v281 = vadd.f32 %v40, %v225
  %v282 = vadd.f32 %v41, %v228
  %v283 = vadd.f32 %v42, %v233
  %v284 = vadd.f32 %v43, %v236
  %v285 = vadd.f32 %v44, %v241
  %v286 = vadd.f32 %v45, %v244
  %v287 = vadd.f32 %v46, %v249
  %v288 = vadd.f32 %v47, %v252
  %v289 = vadd.f32 %v48, %v257
  %v290 = vadd.f32 %v49, %v260
  %v291 = vadd.f32 %v50, %v265
  %v292 = vadd.f32 %v51, %v268
  %v293 = vadd.f32 %v52, %v273
  %v294 = vadd.f32 %v53, %v276
  %295 = vst [vmem:[#allocation2] sm:$0xff] %v279
  %296 = vst [vmem:[#allocation2 + $0x8] sm:$0xff] %v280
  %297 = vst [vmem:[#allocation2 + $0x10] sm:$0xff] %v281
  %298 = vst [vmem:[#allocation2 + $0x18] sm:$0xff] %v282
  %299 = vst [vmem:[#allocation2 + $0x20] sm:$0xff] %v283
  %300 = vst [vmem:[#allocation2 + $0x28] sm:$0xff] %v284
  %301 = vst [vmem:[#allocation2 + $0x30] sm:$0xff] %v285
  %302 = vst [vmem:[#allocation2 + $0x38] sm:$0xff] %v286
  %303 = vst [vmem:[#allocation2 + $0x40] sm:$0xff] %v287
  %304 = vst [vmem:[#allocation2 + $0x48] sm:$0xff] %v288
  %305 = vst [vmem:[#allocation2 + $0x50] sm:$0xff] %v289
  %306 = vst [vmem:[#allocation2 + $0x58] sm:$0xff] %v290
  %307 = vst [vmem:[#allocation2 + $0x60] sm:$0xff] %v291
  %308 = vst [vmem:[#allocation2 + $0x68] sm:$0xff] %v292
  %309 = vst [vmem:[#allocation2 + $0x70] sm:$0xff] %v293
  %310 = vst [vmem:[#allocation2 + $0x78] sm:$0xff] %v294
  // Predicated region
  $region22: #{gcn_forward.4} parent=0 // pred_check
    %p311 = pneg %p18
  $region23: #{gcn_forward.4} parent=0 // pred_check_branch
    %313 = sbr.rel (%p311) target = $region25
  $region24: #{gcn_forward.4} parent=0 // pred_region
    %v314 = vld [vmem:[#allocation2] sm:$0xff]
    %v315 = vld [vmem:[#allocation2 + $0x8] sm:$0xff]
    %v316 = vld [vmem:[#allocation2 + $0x10] sm:$0xff]
    %v317 = vld [vmem:[#allocation2 + $0x18] sm:$0xff]
    %v318 = vld [vmem:[#allocation2 + $0x20] sm:$0xff]
    %v319 = vld [vmem:[#allocation2 + $0x28] sm:$0xff]
    %v320 = vld [vmem:[#allocation2 + $0x30] sm:$0xff]
    %v321 = vld [vmem:[#allocation2 + $0x38] sm:$0xff]
    %v322 = vld [vmem:[#allocation2 + $0x40] sm:$0xff]
    %v323 = vld [vmem:[#allocation2 + $0x48] sm:$0xff]
    %v324 = vld [vmem:[#allocation2 + $0x50] sm:$0xff]
    %v325 = vld [vmem:[#allocation2 + $0x58] sm:$0xff]
    %v326 = vld [vmem:[#allocation2 + $0x60] sm:$0xff]
    %v327 = vld [vmem:[#allocation2 + $0x68] sm:$0xff]
    %v328 = vld [vmem:[#allocation2 + $0x70] sm:$0xff]
    %v329 = vld [vmem:[#allocation2 + $0x78] sm:$0xff]
    %v330 = vpack.c.bf16 %v315, %v314
    %v331 = vpack.c.bf16 %v317, %v316
    %v332 = vpack.c.bf16 %v319, %v318
    %v333 = vpack.c.bf16 %v321, %v320
    %v334 = vpack.c.bf16 %v323, %v322
    %v335 = vpack.c.bf16 %v325, %v324
    %v336 = vpack.c.bf16 %v327, %v326
    %v337 = vpack.c.bf16 %v329, %v328
    %v338 = vld [vmem:[%s2] sm:$0xf]
    %v339 = vld [vmem:[%s2 + $0x4] sm:$0xf]
    %v340 = vld [vmem:[%s2 + $0x8] sm:$0xf]
    %v341 = vld [vmem:[%s2 + $0xc] sm:$0xf]
    %v342 = vld [vmem:[%s2 + $0x10] sm:$0xf]
    %v343 = vld [vmem:[%s2 + $0x14] sm:$0xf]
    %v344 = vld [vmem:[%s2 + $0x18] sm:$0xf]
    %v345 = vld [vmem:[%s2 + $0x1c] sm:$0xf]
    %v346 = vld [vmem:[%s2 + $0x20] sm:$0xf]
    %v347 = vld [vmem:[%s2 + $0x24] sm:$0xf]
    %v348 = vld [vmem:[%s2 + $0x28] sm:$0xf]
    %v349 = vld [vmem:[%s2 + $0x2c] sm:$0xf]
    %v350 = vld [vmem:[%s2 + $0x30] sm:$0xf]
    %v351 = vld [vmem:[%s2 + $0x34] sm:$0xf]
    %v352 = vld [vmem:[%s2 + $0x38] sm:$0xf]
    %v353 = vld [vmem:[%s2 + $0x3c] sm:$0xf]
    %v354 = vld [vmem:[%s3] sm:$0x1]
    %v356 = vlaneseq
    %v357 = vshrl.u32 %v356, 7
    %v358 = vsub.s32 0, %v357
    %v359 = vrot.slane %v354, %v358
    %v377 = vunpack.c.l.b16 %v338
    %v378 = vunpack.c.l.b16 %v339
    %v379 = vunpack.c.l.b16 %v340
    %v380 = vunpack.c.l.b16 %v341
    %v381 = vunpack.c.l.b16 %v342
    %v382 = vunpack.c.l.b16 %v343
    %v383 = vunpack.c.l.b16 %v344
    %v384 = vunpack.c.l.b16 %v345
    %v385 = vunpack.c.l.b16 %v346
    %v386 = vunpack.c.l.b16 %v347
    %v387 = vunpack.c.l.b16 %v348
    %v388 = vunpack.c.l.b16 %v349
    %v389 = vunpack.c.l.b16 %v350
    %v390 = vunpack.c.l.b16 %v351
    %v391 = vunpack.c.l.b16 %v352
    %v392 = vunpack.c.l.b16 %v353
    %v393 = vpack.c.b16 %v378, %v377
    %v394 = vpack.c.b16 %v380, %v379
    %v395 = vpack.c.b16 %v382, %v381
    %v396 = vpack.c.b16 %v384, %v383
    %v397 = vpack.c.b16 %v386, %v385
    %v398 = vpack.c.b16 %v388, %v387
    %v399 = vpack.c.b16 %v390, %v389
    %v400 = vpack.c.b16 %v392, %v391
    %409 = vmatprep.subr.bf16.mxu0 0
    %410 = vmatpush1.bf16.msra.mxu0 %v400
    %411 = vmatprep.subr.bf16.mxu0 0
    %412 = vmatpush1.bf16.msra.mxu0 %v399
    %413 = vmatprep.subr.bf16.mxu0 0
    %414 = vmatpush1.bf16.msra.mxu0 %v398
    %415 = vmatprep.subr.bf16.mxu0 0
    %416 = vmatpush1.bf16.msra.mxu0 %v397
    %417 = vmatprep.subr.bf16.mxu0 0
    %418 = vmatpush1.bf16.msra.mxu0 %v396
    %419 = vmatprep.subr.bf16.mxu0 0
    %420 = vmatpush1.bf16.msra.mxu0 %v395
    %421 = vmatprep.subr.bf16.mxu0 0
    %422 = vmatpush1.bf16.msra.mxu0 %v394
    %423 = vmatprep.subr.bf16.mxu0 0
    %424 = vmatpush1.bf16.msra.mxu0 %v393
    %425 = vmatprep.subr.bf16.mxu0 0
    %426 = vmatpush2.bf16.msra.mxu0 0
    %427 = vmatprep.subr.bf16.mxu0 0
    %428 = vmatpush2.bf16.msra.mxu0 0
    %429 = vmatprep.subr.bf16.mxu0 0
    %430 = vmatpush2.bf16.msra.mxu0 0
    %431 = vmatprep.subr.bf16.mxu0 0
    %432 = vmatpush2.bf16.msra.mxu0 0
    %433 = vmatprep.subr.bf16.mxu0 0
    %434 = vmatpush2.bf16.msra.mxu0 0
    %435 = vmatprep.subr.bf16.mxu0 0
    %436 = vmatpush2.bf16.msra.mxu0 0
    %437 = vmatprep.subr.bf16.mxu0 0
    %438 = vmatpush2.bf16.msra.mxu0 0
    %439 = vmatprep.subr.bf16.mxu0 0
    %440 = vmatpush2.bf16.msra.mxu0 0
    %441 = vmatprep.mubr.bf16.mxu0 0
    %442 = vmatmul.mubr.bf16.gmra.mxu0 %v330
    %v443 = vpop.f32.mrf.mxu0
    %v444 = vadd.f32 %v359, %v443
    %v445 = vpop.f32.mrf.mxu0
    %v446 = vpop.f32.mrf.mxu0
    %v447 = vadd.f32 %v359, %v446
    %v448 = vpop.f32.mrf.mxu0
    %449 = vmatprep.mubr.bf16.mxu0 0
    %450 = vmatmul.mubr.bf16.gmra.mxu0 %v331
    %v451 = vpop.f32.mrf.mxu0
    %v452 = vadd.f32 %v359, %v451
    %v453 = vpop.f32.mrf.mxu0
    %v454 = vpop.f32.mrf.mxu0
    %v455 = vadd.f32 %v359, %v454
    %v456 = vpop.f32.mrf.mxu0
    %457 = vmatprep.mubr.bf16.mxu0 0
    %458 = vmatmul.mubr.bf16.gmra.mxu0 %v332
    %v459 = vpop.f32.mrf.mxu0
    %v460 = vadd.f32 %v359, %v459
    %v461 = vpop.f32.mrf.mxu0
    %v462 = vpop.f32.mrf.mxu0
    %v463 = vadd.f32 %v359, %v462
    %v464 = vpop.f32.mrf.mxu0
    %465 = vmatprep.mubr.bf16.mxu0 0
    %466 = vmatmul.mubr.bf16.gmra.mxu0 %v333
    %v467 = vpop.f32.mrf.mxu0
    %v468 = vadd.f32 %v359, %v467
    %v469 = vpop.f32.mrf.mxu0
    %v470 = vpop.f32.mrf.mxu0
    %v471 = vadd.f32 %v359, %v470
    %v472 = vpop.f32.mrf.mxu0
    %473 = vmatprep.mubr.bf16.mxu0 0
    %474 = vmatmul.mubr.bf16.gmra.mxu0 %v334
    %v475 = vpop.f32.mrf.mxu0
    %v476 = vadd.f32 %v359, %v475
    %v477 = vpop.f32.mrf.mxu0
    %v478 = vpop.f32.mrf.mxu0
    %v479 = vadd.f32 %v359, %v478
    %v480 = vpop.f32.mrf.mxu0
    %481 = vmatprep.mubr.bf16.mxu0 0
    %482 = vmatmul.mubr.bf16.gmra.mxu0 %v335
    %v483 = vpop.f32.mrf.mxu0
    %v484 = vadd.f32 %v359, %v483
    %v485 = vpop.f32.mrf.mxu0
    %v486 = vpop.f32.mrf.mxu0
    %v487 = vadd.f32 %v359, %v486
    %v488 = vpop.f32.mrf.mxu0
    %489 = vmatprep.mubr.bf16.mxu0 0
    %490 = vmatmul.mubr.bf16.gmra.mxu0 %v336
    %v491 = vpop.f32.mrf.mxu0
    %v492 = vadd.f32 %v359, %v491
    %v493 = vpop.f32.mrf.mxu0
    %v494 = vpop.f32.mrf.mxu0
    %v495 = vadd.f32 %v359, %v494
    %v496 = vpop.f32.mrf.mxu0
    %497 = vmatprep.mubr.bf16.mxu0 0
    %498 = vmatmul.mubr.bf16.gmra.mxu0 %v337
    %v499 = vpop.f32.mrf.mxu0
    %v500 = vadd.f32 %v359, %v499
    %v501 = vpop.f32.mrf.mxu0
    %v502 = vpop.f32.mrf.mxu0
    %v503 = vadd.f32 %v359, %v502
    %v504 = vpop.f32.mrf.mxu0
    %505 = vdwg.mxu0
    %v506 = vpack.c.bf16 %v447, %v444
    %v507 = vpack.c.bf16 %v455, %v452
    %v508 = vpack.c.bf16 %v463, %v460
    %v509 = vpack.c.bf16 %v471, %v468
    %v510 = vpack.c.bf16 %v479, %v476
    %v511 = vpack.c.bf16 %v487, %v484
    %v512 = vpack.c.bf16 %v495, %v492
    %v513 = vpack.c.bf16 %v503, %v500
    %v522 = vunpack.c.l.b16 %v506
    %v523 = vunpack.c.h.b16 %v506
    %v524 = vunpack.c.l.b16 %v507
    %v525 = vunpack.c.h.b16 %v507
    %v526 = vunpack.c.l.b16 %v508
    %v527 = vunpack.c.h.b16 %v508
    %v528 = vunpack.c.l.b16 %v509
    %v529 = vunpack.c.h.b16 %v509
    %v530 = vunpack.c.l.b16 %v510
    %v531 = vunpack.c.h.b16 %v510
    %v532 = vunpack.c.l.b16 %v511
    %v533 = vunpack.c.h.b16 %v511
    %v534 = vunpack.c.l.b16 %v512
    %v535 = vunpack.c.h.b16 %v512
    %v536 = vunpack.c.l.b16 %v513
    %v537 = vunpack.c.h.b16 %v513
    %v538 = vpack.c.b16 %v522, %v522
    %v539 = vpack.c.b16 %v523, %v523
    %v540 = vpack.c.b16 %v524, %v524
    %v541 = vpack.c.b16 %v525, %v525
    %v542 = vpack.c.b16 %v526, %v526
    %v543 = vpack.c.b16 %v527, %v527
    %v544 = vpack.c.b16 %v528, %v528
    %v545 = vpack.c.b16 %v529, %v529
    %v546 = vpack.c.b16 %v530, %v530
    %v547 = vpack.c.b16 %v531, %v531
    %v548 = vpack.c.b16 %v532, %v532
    %v549 = vpack.c.b16 %v533, %v533
    %v550 = vpack.c.b16 %v534, %v534
    %v551 = vpack.c.b16 %v535, %v535
    %v552 = vpack.c.b16 %v536, %v536
    %v553 = vpack.c.b16 %v537, %v537
    %570 = vst [vmem:[%s4] sm:$0xf] %v538
    %571 = vst [vmem:[%s4 + $0x4] sm:$0xf] %v539
    %572 = vst [vmem:[%s4 + $0x8] sm:$0xf] %v540
    %573 = vst [vmem:[%s4 + $0xc] sm:$0xf] %v541
    %574 = vst [vmem:[%s4 + $0x10] sm:$0xf] %v542
    %575 = vst [vmem:[%s4 + $0x14] sm:$0xf] %v543
    %576 = vst [vmem:[%s4 + $0x18] sm:$0xf] %v544
    %577 = vst [vmem:[%s4 + $0x1c] sm:$0xf] %v545
    %578 = vst [vmem:[%s4 + $0x20] sm:$0xf] %v546
    %579 = vst [vmem:[%s4 + $0x24] sm:$0xf] %v547
    %580 = vst [vmem:[%s4 + $0x28] sm:$0xf] %v548
    %581 = vst [vmem:[%s4 + $0x2c] sm:$0xf] %v549
    %582 = vst [vmem:[%s4 + $0x30] sm:$0xf] %v550
    %583 = vst [vmem:[%s4 + $0x34] sm:$0xf] %v551
    %584 = vst [vmem:[%s4 + $0x38] sm:$0xf] %v552
    %585 = vst [vmem:[%s4 + $0x3c] sm:$0xf] %v553
  $region25: #{gcn_forward.4} parent=0 // pred_fallthru
    _
  // Predicated region
  $region26: #{gcn_forward.4} parent=0 // pred_check
    _
  $region27: #{gcn_forward.4} parent=0 // pred_check_branch
    %587 = sbr.rel (0) target = $region29
  $region28: #{gcn_forward.4} parent=0 // pred_region
    _
  $region29: #{gcn_forward.4} parent=0 // pred_fallthru
    _
  // Predicated region
  $region30: #{gcn_forward.4} parent=0 // pred_check
    _
  $region31: #{gcn_forward.4} parent=0 // pred_check_branch
    %589 = sbr.rel (0) target = $region33
  $region32: #{gcn_forward.4} parent=0 // pred_region
    _
  $region33: #{gcn_forward.4} parent=0 // pred_fallthru
    _

</llo_original>
